<compile_context>
chip_gen: v7x
topology: tpu7x:2x2x1
jax: 0.10.0
libtpu: 0.0.40
codegen_flags: <defaults>
</compile_context>

<pallas_src>
import math
import numpy as np
import jax
import jax.numpy as jnp
from jax.experimental import pallas as pl
from jax.experimental.pallas import tpu as pltpu

# Small shapes consistent with the module's forward semantics
B, S, D, H = 2, 8, 32, 4
HD = D // H                        # head_dim
HALF = D // 2
SCALE = 1.0 / math.sqrt(HD)
NEG_BIAS = -1e9 * SCALE            # mask bias, pre-scaled (scale folded into Wq)

assert HALF % HD == 0, "heads must not straddle the even/odd rotated halves (H must be even)"
HEADS_PER_HALF = HALF // HD


# ----------------------------- Pallas kernel ----------------------------- #
def mha_kernel(q_in_ref, k_in_ref, v_in_ref, cos_ref, sin_ref, bias_ref,
               wq_ref, wk_ref, wv_ref, wo_ref, out_ref):
    xq = q_in_ref[...]             # (B*S, D)
    xk = k_in_ref[...]             # (B*S, D)
    xv = v_in_ref[...]             # (B*S, D)
    cos = cos_ref[...]             # (B*S, D//2) -- position tables, pre-tiled over batch
    sin = sin_ref[...]             # (B*S, D//2)
    kb = bias_ref[...]             # (B, S) pre-scaled key bias (key_mask * -1e9 / sqrt(HD))
    wo = wo_ref[...]               # (D, D)

    # Batched projections over all B*S rows (weights pre-transposed; Wq/Wk columns
    # pre-permuted to [even | odd]; 1/sqrt(head_dim) folded into Wq).
    q = jnp.dot(xq, wq_ref[...], preferred_element_type=jnp.float32)
    k = jnp.dot(xk, wk_ref[...], preferred_element_type=jnp.float32)
    v = jnp.dot(xv, wv_ref[...], preferred_element_type=jnp.float32)

    # RoPE on contiguous halves; no lane concatenates. q_er == rope(q)[:, :HALF],
    # q_or == rope(q)[:, HALF:] of the PyTorch layout cat([even_rot, odd_rot], -1).
    qe, qo = q[:, :HALF], q[:, HALF:]
    ke, ko = k[:, :HALF], k[:, HALF:]
    q_er = qe * cos - qo * sin
    q_or = qo * cos + qe * sin
    k_er = ke * cos - ko * sin
    k_or = ko * cos + ke * sin

    for b in range(B):             # static unroll over batch (single grid step)
        r0 = b * S
        bias = kb[b:b + 1, :]      # (1, S): broadcast over the S query sublanes
        y_acc = None
        score_parts = []
        for h in range(H):         # static unroll over heads
            c0 = (h % HEADS_PER_HALF) * HD
            if h < HEADS_PER_HALF:
                qh = q_er[r0:r0 + S, c0:c0 + HD]
                kh = k_er[r0:r0 + S, c0:c0 + HD]
            else:
                qh = q_or[r0:r0 + S, c0:c0 + HD]
                kh = k_or[r0:r0 + S, c0:c0 + HD]
            vh = v[r0:r0 + S, h * HD:(h + 1) * HD]

            logits = jax.lax.dot_general(qh, kh, (((1,), (1,)), ((), ())),
                                         preferred_element_type=jnp.float32)
            logits = logits + bias
            m = jnp.max(logits, axis=-1, keepdims=True)
            e = jnp.exp(logits - m)
            # divide -> EUP reciprocal (off the VALU path)
            p = e * pl.reciprocal(jnp.sum(e, axis=-1, keepdims=True), approx=False)
            score_parts.append(p)

            ctx = jnp.dot(p, vh, preferred_element_type=jnp.float32)
            # accumulate the output projection per head (no merged-context concatenate)
            term = jnp.dot(ctx, wo[h * HD:(h + 1) * HD, :],
                           preferred_element_type=jnp.float32)
            y_acc = term if y_acc is None else y_acc + term

        # One lane-denser (S, D + H*S) = (8, 64) store per batch: [ y | p_0 | ... | p_{H-1} ]
        out_ref[b] = jnp.concatenate([y_acc] + score_parts, axis=-1)


# ----------------------------- wrapper ----------------------------- #
def multi_head_attention(querys, keys, values, key_padding_mask, params, cos_bs, sin_bs):
    bs = querys.shape[0]

    # Pre-scaled key-bias row; equals (mask * -1e9) / sqrt(head_dim) in the original module.
    key_bias = key_padding_mask.astype(jnp.float32) * NEG_BIAS          # (B, S)

    # Fold batch into the sublane (row) axis for the projection matmuls.
    q2 = querys.reshape(bs * S, D)
    k2 = keys.reshape(bs * S, D)
    v2 = values.reshape(bs * S, D)

    def full(shape):
        zeros = (0,) * len(shape)
        return pl.BlockSpec(shape, lambda i, _z=zeros: _z)

    in_specs = [
        full((bs * S, D)), full((bs * S, D)), full((bs * S, D)),        # q, k, v (batched rows)
        full((bs * S, HALF)), full((bs * S, HALF)),                      # cos, sin (tiled over B)
        full((bs, S)),                                                   # key bias
        full((D, D)), full((D, D)), full((D, D)), full((D, D)),          # wq wk wv wo
    ]
    out_specs = pl.BlockSpec((bs, S, D + H * S), lambda i: (0, 0, 0))
    out_shape = jax.ShapeDtypeStruct((bs, S, D + H * S), jnp.float32)

    packed = pl.pallas_call(
        mha_kernel,
        out_shape=out_shape,
        grid_spec=pltpu.PrefetchScalarGridSpec(
            num_scalar_prefetch=0, grid=(1,),                            # single step: launch-bound size
            in_specs=in_specs, out_specs=out_specs),
        compiler_params=pltpu.CompilerParams(
            dimension_semantics=("arbitrary",)),
    )(q2, k2, v2, cos_bs, sin_bs, key_bias,
      params["wq"], params["wk"], params["wv"], params["wo"])

    y = packed[:, :, :D]                                                 # (B, S, D)
    scores = packed[:, :, D:].reshape(bs, S, H, S).transpose(0, 2, 1, 3)  # (B, H, S, S)
    return y, scores


# ----------------------------- parameter setup ----------------------------- #
def init_params(key):
    ks = jax.random.split(key, 4)
    lim = 1.0 / math.sqrt(D)
    # PyTorch nn.Linear(bias=False): weight is (out_features, in_features); y = x @ W.T
    return {
        "wq": jax.random.uniform(ks[0], (D, D), jnp.float32, -lim, lim),
        "wk": jax.random.uniform(ks[1], (D, D), jnp.float32, -lim, lim),
        "wv": jax.random.uniform(ks[2], (D, D), jnp.float32, -lim, lim),
        "wo": jax.random.uniform(ks[3], (D, D), jnp.float32, -lim, lim),
    }


def to_kernel_params(p):
    # One-time (host-side) parameter transform:
    #  * transpose to (in, out) so the kernel does x @ W
    #  * permute Wq/Wk output features to [even | odd] so RoPE uses contiguous halves
    #  * fold 1/sqrt(head_dim) into Wq (RoPE is linear -> exact)
    perm = jnp.concatenate([jnp.arange(0, D, 2), jnp.arange(1, D, 2)])
    return {
        "wq": p["wq"].T[:, perm] * SCALE,
        "wk": p["wk"].T[:, perm],
        "wv": p["wv"].T,
        "wo": p["wo"].T,
    }


# ----------------------------- pure-JAX reference ----------------------------- #
def ref_rope(t):
    _, s, dm = t.shape
    pos = jnp.arange(s, dtype=jnp.float32)[:, None]
    freqs = jnp.exp(jnp.arange(0, dm, 2, dtype=jnp.float32) * (-(math.log(10000.0) / dm)))
    ang = pos * freqs
    c = jnp.cos(ang)[None]
    sn = jnp.sin(ang)[None]
    te = t[..., 0::2]
    to = t[..., 1::2]
    return jnp.concatenate([te * c - to * sn, to * c + te * sn], axis=-1)


def ref_mha(querys, keys, values, mask, p):
    bs = querys.shape[0]

    def split(t):
        return t.reshape(bs, S, H, HD).transpose(0, 2, 1, 3)

    q = split(ref_rope(querys @ p["wq"].T))
    k = split(ref_rope(keys @ p["wk"].T))
    v = split(values @ p["wv"].T)
    logits = jnp.einsum("bhqd,bhkd->bhqk", q, k)
    logits = (logits + mask * (-1e9)) * SCALE       # PyTorch: add mask*-1e9, then /sqrt(head_dim)
    m = jnp.max(logits, axis=-1, keepdims=True)
    e = jnp.exp(logits - m)
    scores = e / jnp.sum(e, axis=-1, keepdims=True)
    ctx = jnp.einsum("bhqk,bhkd->bhqd", scores, v)
    ctx = ctx.transpose(0, 2, 1, 3).reshape(bs, S, D)
    return ctx @ p["wo"].T, scores


# ----------------------------- main ----------------------------- #
if __name__ == "__main__":
    key = jax.random.PRNGKey(0)
    kq, kk, kv, kp = jax.random.split(key, 4)

    querys = jax.random.normal(kq, (B, S, D), dtype=jnp.float32)
    keys = jax.random.normal(kk, (B, S, D), dtype=jnp.float32)
    values = jax.random.normal(kv, (B, S, D), dtype=jnp.float32)

    # Padding-style key mask (B, S): 1.0 marks masked key positions
    lens = jnp.array([6, 8], dtype=jnp.int32)
    key_mask = (jnp.arange(S)[None, :] >= lens[:, None]).astype(jnp.float32)      # (B, S)
    # Full (B, 1, S, S) mask only for the PyTorch-style reference
    attn_mask = jnp.broadcast_to(key_mask[:, None, None, :], (B, 1, S, S)).astype(jnp.float32)

    # RoPE tables (same formula as the PyTorch module, applied on full d_model),
    # pre-tiled over the batch so they align with the (B*S, D) row layout.
    pos = jnp.arange(S, dtype=jnp.float32)[:, None]
    freqs = jnp.exp(jnp.arange(0, D, 2, dtype=jnp.float32) * (-(math.log(10000.0) / D)))
    ang = pos * freqs                       # (S, D//2)
    cos_bs = jnp.tile(jnp.cos(ang), (B, 1))  # (B*S, D//2)
    sin_bs = jnp.tile(jnp.sin(ang), (B, 1))  # (B*S, D//2)

    torch_style_params = init_params(kp)
    kernel_params = to_kernel_params(torch_style_params)

    run = jax.jit(multi_head_attention)
    y, scores = run(querys, keys, values, key_mask, kernel_params, cos_bs, sin_bs)
    y = jax.block_until_ready(y)
    scores = jax.block_until_ready(scores)

    # Verify against a pure-JAX mirror of the PyTorch forward
    y_ref, scores_ref = ref_mha(querys, keys, values, attn_mask, torch_style_params)
    np.testing.assert_allclose(np.asarray(y), np.asarray(y_ref), rtol=2e-4, atol=2e-4)
    np.testing.assert_allclose(np.asarray(scores), np.asarray(scores_ref), rtol=2e-4, atol=2e-4)

    print("KERNEL_OK")
</pallas_src>

<mosaic_0001>
module attributes {stable_mosaic.version = 11 : i64} {
  func.func @mha_kernel(%arg0: i32, %arg1: memref<16x32xf32, #tpu.memory_space<vmem>>, %arg2: memref<16x32xf32, #tpu.memory_space<vmem>>, %arg3: memref<16x32xf32, #tpu.memory_space<vmem>>, %arg4: memref<16x16xf32, #tpu.memory_space<vmem>>, %arg5: memref<16x16xf32, #tpu.memory_space<vmem>>, %arg6: memref<2x8xf32, #tpu.memory_space<vmem>>, %arg7: memref<32x32xf32, #tpu.memory_space<vmem>>, %arg8: memref<32x32xf32, #tpu.memory_space<vmem>>, %arg9: memref<32x32xf32, #tpu.memory_space<vmem>>, %arg10: memref<32x32xf32, #tpu.memory_space<vmem>>, %arg11: memref<2x8x64xf32, #tpu.memory_space<vmem>>) attributes {dimension_semantics = [#tpu.dimension_semantics<arbitrary>], iteration_bounds = array<i64: 1>, scalar_prefetch = 0 : i64, scratch_operands = 0 : i64, tpu.core_type = #tpu.core_type<tc>, window_params = [{pipeline_mode = #tpu.pipeline_mode<synchronous>, transform_indices = @transform_0, window_bounds = array<i64: 16, 32>}, {pipeline_mode = #tpu.pipeline_mode<synchronous>, transform_indices = @transform_1, window_bounds = array<i64: 16, 32>}, {pipeline_mode = #tpu.pipeline_mode<synchronous>, transform_indices = @transform_2, window_bounds = array<i64: 16, 32>}, {pipeline_mode = #tpu.pipeline_mode<synchronous>, transform_indices = @transform_3, window_bounds = array<i64: 16, 16>}, {pipeline_mode = #tpu.pipeline_mode<synchronous>, transform_indices = @transform_4, window_bounds = array<i64: 16, 16>}, {pipeline_mode = #tpu.pipeline_mode<synchronous>, transform_indices = @transform_5, window_bounds = array<i64: 2, 8>}, {pipeline_mode = #tpu.pipeline_mode<synchronous>, transform_indices = @transform_6, window_bounds = array<i64: 32, 32>}, {pipeline_mode = #tpu.pipeline_mode<synchronous>, transform_indices = @transform_7, window_bounds = array<i64: 32, 32>}, {pipeline_mode = #tpu.pipeline_mode<synchronous>, transform_indices = @transform_8, window_bounds = array<i64: 32, 32>}, {pipeline_mode = #tpu.pipeline_mode<synchronous>, transform_indices = @transform_9, window_bounds = array<i64: 32, 32>}, {pipeline_mode = #tpu.pipeline_mode<synchronous>, transform_indices = @transform_10, window_bounds = array<i64: 2, 8, 64>}]} {
    %c0 = arith.constant 0 : index
    %c0_0 = arith.constant 0 : index
    %0 = vector.load %arg1[%c0, %c0_0] : memref<16x32xf32, #tpu.memory_space<vmem>>, vector<16x32xf32>
    %c0_1 = arith.constant 0 : index
    %c0_2 = arith.constant 0 : index
    %1 = vector.load %arg2[%c0_1, %c0_2] : memref<16x32xf32, #tpu.memory_space<vmem>>, vector<16x32xf32>
    %c0_3 = arith.constant 0 : index
    %c0_4 = arith.constant 0 : index
    %2 = vector.load %arg3[%c0_3, %c0_4] : memref<16x32xf32, #tpu.memory_space<vmem>>, vector<16x32xf32>
    %c0_5 = arith.constant 0 : index
    %c0_6 = arith.constant 0 : index
    %3 = vector.load %arg4[%c0_5, %c0_6] : memref<16x16xf32, #tpu.memory_space<vmem>>, vector<16x16xf32>
    %c0_7 = arith.constant 0 : index
    %c0_8 = arith.constant 0 : index
    %4 = vector.load %arg5[%c0_7, %c0_8] : memref<16x16xf32, #tpu.memory_space<vmem>>, vector<16x16xf32>
    %c0_9 = arith.constant 0 : index
    %c0_10 = arith.constant 0 : index
    %5 = vector.load %arg6[%c0_9, %c0_10] : memref<2x8xf32, #tpu.memory_space<vmem>>, vector<2x8xf32>
    %c0_11 = arith.constant 0 : index
    %c0_12 = arith.constant 0 : index
    %6 = vector.load %arg10[%c0_11, %c0_12] : memref<32x32xf32, #tpu.memory_space<vmem>>, vector<32x32xf32>
    %c0_13 = arith.constant 0 : index
    %c0_14 = arith.constant 0 : index
    %7 = vector.load %arg7[%c0_13, %c0_14] : memref<32x32xf32, #tpu.memory_space<vmem>>, vector<32x32xf32>
    %cst = arith.constant dense<0.000000e+00> : vector<16x32xf32>
    %8 = tpu.matmul %0, %7, %cst {dimension_numbers = #tpu.dot_dimension_numbers<[1], [0], [0], [1], [0, 0, 1, 1], [], []>} : vector<16x32xf32>, vector<32x32xf32>, vector<16x32xf32> -> vector<16x32xf32>
    %c0_15 = arith.constant 0 : index
    %c0_16 = arith.constant 0 : index
    %9 = vector.load %arg8[%c0_15, %c0_16] : memref<32x32xf32, #tpu.memory_space<vmem>>, vector<32x32xf32>
    %cst_17 = arith.constant dense<0.000000e+00> : vector<16x32xf32>
    %10 = tpu.matmul %1, %9, %cst_17 {dimension_numbers = #tpu.dot_dimension_numbers<[1], [0], [0], [1], [0, 0, 1, 1], [], []>} : vector<16x32xf32>, vector<32x32xf32>, vector<16x32xf32> -> vector<16x32xf32>
    %c0_18 = arith.constant 0 : index
    %c0_19 = arith.constant 0 : index
    %11 = vector.load %arg9[%c0_18, %c0_19] : memref<32x32xf32, #tpu.memory_space<vmem>>, vector<32x32xf32>
    %cst_20 = arith.constant dense<0.000000e+00> : vector<16x32xf32>
    %12 = tpu.matmul %2, %11, %cst_20 {dimension_numbers = #tpu.dot_dimension_numbers<[1], [0], [0], [1], [0, 0, 1, 1], [], []>} : vector<16x32xf32>, vector<32x32xf32>, vector<16x32xf32> -> vector<16x32xf32>
    %13 = vector.extract_strided_slice %8 {offsets = [0, 0], sizes = [16, 16], strides = [1, 1]} : vector<16x32xf32> to vector<16x16xf32>
    %14 = vector.extract_strided_slice %8 {offsets = [0, 16], sizes = [16, 16], strides = [1, 1]} : vector<16x32xf32> to vector<16x16xf32>
    %15 = vector.extract_strided_slice %10 {offsets = [0, 0], sizes = [16, 16], strides = [1, 1]} : vector<16x32xf32> to vector<16x16xf32>
    %16 = vector.extract_strided_slice %10 {offsets = [0, 16], sizes = [16, 16], strides = [1, 1]} : vector<16x32xf32> to vector<16x16xf32>
    %17 = arith.mulf %13, %3 : vector<16x16xf32>
    %18 = arith.mulf %14, %4 : vector<16x16xf32>
    %19 = arith.subf %17, %18 : vector<16x16xf32>
    %20 = arith.mulf %14, %3 : vector<16x16xf32>
    %21 = arith.mulf %13, %4 : vector<16x16xf32>
    %22 = arith.addf %20, %21 : vector<16x16xf32>
    %23 = arith.mulf %15, %3 : vector<16x16xf32>
    %24 = arith.mulf %16, %4 : vector<16x16xf32>
    %25 = arith.subf %23, %24 : vector<16x16xf32>
    %26 = arith.mulf %16, %3 : vector<16x16xf32>
    %27 = arith.mulf %15, %4 : vector<16x16xf32>
    %28 = arith.addf %26, %27 : vector<16x16xf32>
    %29 = vector.extract_strided_slice %5 {offsets = [0, 0], sizes = [1, 8], strides = [1, 1]} : vector<2x8xf32> to vector<1x8xf32>
    %30 = vector.extract_strided_slice %19 {offsets = [0, 0], sizes = [8, 8], strides = [1, 1]} : vector<16x16xf32> to vector<8x8xf32>
    %31 = vector.extract_strided_slice %25 {offsets = [0, 0], sizes = [8, 8], strides = [1, 1]} : vector<16x16xf32> to vector<8x8xf32>
    %32 = vector.extract_strided_slice %12 {offsets = [0, 0], sizes = [8, 8], strides = [1, 1]} : vector<16x32xf32> to vector<8x8xf32>
    %cst_21 = arith.constant dense<0.000000e+00> : vector<8x8xf32>
    %33 = tpu.matmul %30, %31, %cst_21 {dimension_numbers = #tpu.dot_dimension_numbers<[1], [1], [0], [0], [0, 0, 1, 0], [], []>} : vector<8x8xf32>, vector<8x8xf32>, vector<8x8xf32> -> vector<8x8xf32>
    %34 = vector.broadcast %29 : vector<1x8xf32> to vector<8x8xf32>
    %35 = arith.addf %33, %34 : vector<8x8xf32>
    %cst_22 = arith.constant dense<0xFF800000> : vector<8xf32>
    %36 = vector.multi_reduction <maximumf>, %35, %cst_22 [1] : vector<8x8xf32> to vector<8xf32>
    %37 = vector.shape_cast %36 : vector<8xf32> to vector<8x1xf32>
    %38 = vector.broadcast %37 : vector<8x1xf32> to vector<8x8xf32>
    %39 = arith.subf %35, %38 : vector<8x8xf32>
    %40 = math.exp %39 : vector<8x8xf32>
    %cst_23 = arith.constant dense<0.000000e+00> : vector<8xf32>
    %41 = vector.multi_reduction <add>, %40, %cst_23 [1] : vector<8x8xf32> to vector<8xf32>
    %42 = vector.shape_cast %41 : vector<8xf32> to vector<8x1xf32>
    %43 = tpu.reciprocal %42 : vector<8x1xf32> -> vector<8x1xf32>
    %44 = vector.broadcast %43 : vector<8x1xf32> to vector<8x8xf32>
    %45 = arith.mulf %40, %44 : vector<8x8xf32>
    %cst_24 = arith.constant dense<0.000000e+00> : vector<8x8xf32>
    %46 = tpu.matmul %45, %32, %cst_24 {dimension_numbers = #tpu.dot_dimension_numbers<[1], [0], [0], [1], [0, 0, 1, 1], [], []>} : vector<8x8xf32>, vector<8x8xf32>, vector<8x8xf32> -> vector<8x8xf32>
    %47 = vector.extract_strided_slice %6 {offsets = [0, 0], sizes = [8, 32], strides = [1, 1]} : vector<32x32xf32> to vector<8x32xf32>
    %cst_25 = arith.constant dense<0.000000e+00> : vector<8x32xf32>
    %48 = tpu.matmul %46, %47, %cst_25 {dimension_numbers = #tpu.dot_dimension_numbers<[1], [0], [0], [1], [0, 0, 1, 1], [], []>} : vector<8x8xf32>, vector<8x32xf32>, vector<8x32xf32> -> vector<8x32xf32>
    %49 = vector.extract_strided_slice %19 {offsets = [0, 8], sizes = [8, 8], strides = [1, 1]} : vector<16x16xf32> to vector<8x8xf32>
    %50 = vector.extract_strided_slice %25 {offsets = [0, 8], sizes = [8, 8], strides = [1, 1]} : vector<16x16xf32> to vector<8x8xf32>
    %51 = vector.extract_strided_slice %12 {offsets = [0, 8], sizes = [8, 8], strides = [1, 1]} : vector<16x32xf32> to vector<8x8xf32>
    %cst_26 = arith.constant dense<0.000000e+00> : vector<8x8xf32>
    %52 = tpu.matmul %49, %50, %cst_26 {dimension_numbers = #tpu.dot_dimension_numbers<[1], [1], [0], [0], [0, 0, 1, 0], [], []>} : vector<8x8xf32>, vector<8x8xf32>, vector<8x8xf32> -> vector<8x8xf32>
    %53 = vector.broadcast %29 : vector<1x8xf32> to vector<8x8xf32>
    %54 = arith.addf %52, %53 : vector<8x8xf32>
    %cst_27 = arith.constant dense<0xFF800000> : vector<8xf32>
    %55 = vector.multi_reduction <maximumf>, %54, %cst_27 [1] : vector<8x8xf32> to vector<8xf32>
    %56 = vector.shape_cast %55 : vector<8xf32> to vector<8x1xf32>
    %57 = vector.broadcast %56 : vector<8x1xf32> to vector<8x8xf32>
    %58 = arith.subf %54, %57 : vector<8x8xf32>
    %59 = math.exp %58 : vector<8x8xf32>
    %cst_28 = arith.constant dense<0.000000e+00> : vector<8xf32>
    %60 = vector.multi_reduction <add>, %59, %cst_28 [1] : vector<8x8xf32> to vector<8xf32>
    %61 = vector.shape_cast %60 : vector<8xf32> to vector<8x1xf32>
    %62 = tpu.reciprocal %61 : vector<8x1xf32> -> vector<8x1xf32>
    %63 = vector.broadcast %62 : vector<8x1xf32> to vector<8x8xf32>
    %64 = arith.mulf %59, %63 : vector<8x8xf32>
    %cst_29 = arith.constant dense<0.000000e+00> : vector<8x8xf32>
    %65 = tpu.matmul %64, %51, %cst_29 {dimension_numbers = #tpu.dot_dimension_numbers<[1], [0], [0], [1], [0, 0, 1, 1], [], []>} : vector<8x8xf32>, vector<8x8xf32>, vector<8x8xf32> -> vector<8x8xf32>
    %66 = vector.extract_strided_slice %6 {offsets = [8, 0], sizes = [8, 32], strides = [1, 1]} : vector<32x32xf32> to vector<8x32xf32>
    %cst_30 = arith.constant dense<0.000000e+00> : vector<8x32xf32>
    %67 = tpu.matmul %65, %66, %cst_30 {dimension_numbers = #tpu.dot_dimension_numbers<[1], [0], [0], [1], [0, 0, 1, 1], [], []>} : vector<8x8xf32>, vector<8x32xf32>, vector<8x32xf32> -> vector<8x32xf32>
    %68 = arith.addf %48, %67 : vector<8x32xf32>
    %69 = vector.extract_strided_slice %22 {offsets = [0, 0], sizes = [8, 8], strides = [1, 1]} : vector<16x16xf32> to vector<8x8xf32>
    %70 = vector.extract_strided_slice %28 {offsets = [0, 0], sizes = [8, 8], strides = [1, 1]} : vector<16x16xf32> to vector<8x8xf32>
    %71 = vector.extract_strided_slice %12 {offsets = [0, 16], sizes = [8, 8], strides = [1, 1]} : vector<16x32xf32> to vector<8x8xf32>
    %cst_31 = arith.constant dense<0.000000e+00> : vector<8x8xf32>
    %72 = tpu.matmul %69, %70, %cst_31 {dimension_numbers = #tpu.dot_dimension_numbers<[1], [1], [0], [0], [0, 0, 1, 0], [], []>} : vector<8x8xf32>, vector<8x8xf32>, vector<8x8xf32> -> vector<8x8xf32>
    %73 = vector.broadcast %29 : vector<1x8xf32> to vector<8x8xf32>
    %74 = arith.addf %72, %73 : vector<8x8xf32>
    %cst_32 = arith.constant dense<0xFF800000> : vector<8xf32>
    %75 = vector.multi_reduction <maximumf>, %74, %cst_32 [1] : vector<8x8xf32> to vector<8xf32>
    %76 = vector.shape_cast %75 : vector<8xf32> to vector<8x1xf32>
    %77 = vector.broadcast %76 : vector<8x1xf32> to vector<8x8xf32>
    %78 = arith.subf %74, %77 : vector<8x8xf32>
    %79 = math.exp %78 : vector<8x8xf32>
    %cst_33 = arith.constant dense<0.000000e+00> : vector<8xf32>
    %80 = vector.multi_reduction <add>, %79, %cst_33 [1] : vector<8x8xf32> to vector<8xf32>
    %81 = vector.shape_cast %80 : vector<8xf32> to vector<8x1xf32>
    %82 = tpu.reciprocal %81 : vector<8x1xf32> -> vector<8x1xf32>
    %83 = vector.broadcast %82 : vector<8x1xf32> to vector<8x8xf32>
    %84 = arith.mulf %79, %83 : vector<8x8xf32>
    %cst_34 = arith.constant dense<0.000000e+00> : vector<8x8xf32>
    %85 = tpu.matmul %84, %71, %cst_34 {dimension_numbers = #tpu.dot_dimension_numbers<[1], [0], [0], [1], [0, 0, 1, 1], [], []>} : vector<8x8xf32>, vector<8x8xf32>, vector<8x8xf32> -> vector<8x8xf32>
    %86 = vector.extract_strided_slice %6 {offsets = [16, 0], sizes = [8, 32], strides = [1, 1]} : vector<32x32xf32> to vector<8x32xf32>
    %cst_35 = arith.constant dense<0.000000e+00> : vector<8x32xf32>
    %87 = tpu.matmul %85, %86, %cst_35 {dimension_numbers = #tpu.dot_dimension_numbers<[1], [0], [0], [1], [0, 0, 1, 1], [], []>} : vector<8x8xf32>, vector<8x32xf32>, vector<8x32xf32> -> vector<8x32xf32>
    %88 = arith.addf %68, %87 : vector<8x32xf32>
    %89 = vector.extract_strided_slice %22 {offsets = [0, 8], sizes = [8, 8], strides = [1, 1]} : vector<16x16xf32> to vector<8x8xf32>
    %90 = vector.extract_strided_slice %28 {offsets = [0, 8], sizes = [8, 8], strides = [1, 1]} : vector<16x16xf32> to vector<8x8xf32>
    %91 = vector.extract_strided_slice %12 {offsets = [0, 24], sizes = [8, 8], strides = [1, 1]} : vector<16x32xf32> to vector<8x8xf32>
    %cst_36 = arith.constant dense<0.000000e+00> : vector<8x8xf32>
    %92 = tpu.matmul %89, %90, %cst_36 {dimension_numbers = #tpu.dot_dimension_numbers<[1], [1], [0], [0], [0, 0, 1, 0], [], []>} : vector<8x8xf32>, vector<8x8xf32>, vector<8x8xf32> -> vector<8x8xf32>
    %93 = vector.broadcast %29 : vector<1x8xf32> to vector<8x8xf32>
    %94 = arith.addf %92, %93 : vector<8x8xf32>
    %cst_37 = arith.constant dense<0xFF800000> : vector<8xf32>
    %95 = vector.multi_reduction <maximumf>, %94, %cst_37 [1] : vector<8x8xf32> to vector<8xf32>
    %96 = vector.shape_cast %95 : vector<8xf32> to vector<8x1xf32>
    %97 = vector.broadcast %96 : vector<8x1xf32> to vector<8x8xf32>
    %98 = arith.subf %94, %97 : vector<8x8xf32>
    %99 = math.exp %98 : vector<8x8xf32>
    %cst_38 = arith.constant dense<0.000000e+00> : vector<8xf32>
    %100 = vector.multi_reduction <add>, %99, %cst_38 [1] : vector<8x8xf32> to vector<8xf32>
    %101 = vector.shape_cast %100 : vector<8xf32> to vector<8x1xf32>
    %102 = tpu.reciprocal %101 : vector<8x1xf32> -> vector<8x1xf32>
    %103 = vector.broadcast %102 : vector<8x1xf32> to vector<8x8xf32>
    %104 = arith.mulf %99, %103 : vector<8x8xf32>
    %cst_39 = arith.constant dense<0.000000e+00> : vector<8x8xf32>
    %105 = tpu.matmul %104, %91, %cst_39 {dimension_numbers = #tpu.dot_dimension_numbers<[1], [0], [0], [1], [0, 0, 1, 1], [], []>} : vector<8x8xf32>, vector<8x8xf32>, vector<8x8xf32> -> vector<8x8xf32>
    %106 = vector.extract_strided_slice %6 {offsets = [24, 0], sizes = [8, 32], strides = [1, 1]} : vector<32x32xf32> to vector<8x32xf32>
    %cst_40 = arith.constant dense<0.000000e+00> : vector<8x32xf32>
    %107 = tpu.matmul %105, %106, %cst_40 {dimension_numbers = #tpu.dot_dimension_numbers<[1], [0], [0], [1], [0, 0, 1, 1], [], []>} : vector<8x8xf32>, vector<8x32xf32>, vector<8x32xf32> -> vector<8x32xf32>
    %108 = arith.addf %88, %107 : vector<8x32xf32>
    %109 = tpu.concatenate %108, %45, %64, %84, %104 in 1 : vector<8x32xf32>, vector<8x8xf32>, vector<8x8xf32>, vector<8x8xf32>, vector<8x8xf32> -> vector<8x64xf32>
    %c0_41 = arith.constant 0 : index
    %c0_42 = arith.constant 0 : index
    %c0_43 = arith.constant 0 : index
    %110 = vector.load %arg11[%c0_41, %c0_42, %c0_43] : memref<2x8x64xf32, #tpu.memory_space<vmem>>, vector<1x8x64xf32>
    %111 = vector.shape_cast %110 : vector<1x8x64xf32> to vector<8x64xf32>
    %112 = vector.shape_cast %109 : vector<8x64xf32> to vector<1x8x64xf32>
    tpu.vector_store %arg11[%c0_41, %c0_42, %c0_43], %112 {strides = array<i32>} : memref<2x8x64xf32, #tpu.memory_space<vmem>>, vector<1x8x64xf32>,
    %113 = vector.extract_strided_slice %5 {offsets = [1, 0], sizes = [1, 8], strides = [1, 1]} : vector<2x8xf32> to vector<1x8xf32>
    %114 = vector.extract_strided_slice %19 {offsets = [8, 0], sizes = [8, 8], strides = [1, 1]} : vector<16x16xf32> to vector<8x8xf32>
    %115 = vector.extract_strided_slice %25 {offsets = [8, 0], sizes = [8, 8], strides = [1, 1]} : vector<16x16xf32> to vector<8x8xf32>
    %116 = vector.extract_strided_slice %12 {offsets = [8, 0], sizes = [8, 8], strides = [1, 1]} : vector<16x32xf32> to vector<8x8xf32>
    %cst_44 = arith.constant dense<0.000000e+00> : vector<8x8xf32>
    %117 = tpu.matmul %114, %115, %cst_44 {dimension_numbers = #tpu.dot_dimension_numbers<[1], [1], [0], [0], [0, 0, 1, 0], [], []>} : vector<8x8xf32>, vector<8x8xf32>, vector<8x8xf32> -> vector<8x8xf32>
    %118 = vector.broadcast %113 : vector<1x8xf32> to vector<8x8xf32>
    %119 = arith.addf %117, %118 : vector<8x8xf32>
    %cst_45 = arith.constant dense<0xFF800000> : vector<8xf32>
    %120 = vector.multi_reduction <maximumf>, %119, %cst_45 [1] : vector<8x8xf32> to vector<8xf32>
    %121 = vector.shape_cast %120 : vector<8xf32> to vector<8x1xf32>
    %122 = vector.broadcast %121 : vector<8x1xf32> to vector<8x8xf32>
    %123 = arith.subf %119, %122 : vector<8x8xf32>
    %124 = math.exp %123 : vector<8x8xf32>
    %cst_46 = arith.constant dense<0.000000e+00> : vector<8xf32>
    %125 = vector.multi_reduction <add>, %124, %cst_46 [1] : vector<8x8xf32> to vector<8xf32>
    %126 = vector.shape_cast %125 : vector<8xf32> to vector<8x1xf32>
    %127 = tpu.reciprocal %126 : vector<8x1xf32> -> vector<8x1xf32>
    %128 = vector.broadcast %127 : vector<8x1xf32> to vector<8x8xf32>
    %129 = arith.mulf %124, %128 : vector<8x8xf32>
    %cst_47 = arith.constant dense<0.000000e+00> : vector<8x8xf32>
    %130 = tpu.matmul %129, %116, %cst_47 {dimension_numbers = #tpu.dot_dimension_numbers<[1], [0], [0], [1], [0, 0, 1, 1], [], []>} : vector<8x8xf32>, vector<8x8xf32>, vector<8x8xf32> -> vector<8x8xf32>
    %131 = vector.extract_strided_slice %6 {offsets = [0, 0], sizes = [8, 32], strides = [1, 1]} : vector<32x32xf32> to vector<8x32xf32>
    %cst_48 = arith.constant dense<0.000000e+00> : vector<8x32xf32>
    %132 = tpu.matmul %130, %131, %cst_48 {dimension_numbers = #tpu.dot_dimension_numbers<[1], [0], [0], [1], [0, 0, 1, 1], [], []>} : vector<8x8xf32>, vector<8x32xf32>, vector<8x32xf32> -> vector<8x32xf32>
    %133 = vector.extract_strided_slice %19 {offsets = [8, 8], sizes = [8, 8], strides = [1, 1]} : vector<16x16xf32> to vector<8x8xf32>
    %134 = vector.extract_strided_slice %25 {offsets = [8, 8], sizes = [8, 8], strides = [1, 1]} : vector<16x16xf32> to vector<8x8xf32>
    %135 = vector.extract_strided_slice %12 {offsets = [8, 8], sizes = [8, 8], strides = [1, 1]} : vector<16x32xf32> to vector<8x8xf32>
    %cst_49 = arith.constant dense<0.000000e+00> : vector<8x8xf32>
    %136 = tpu.matmul %133, %134, %cst_49 {dimension_numbers = #tpu.dot_dimension_numbers<[1], [1], [0], [0], [0, 0, 1, 0], [], []>} : vector<8x8xf32>, vector<8x8xf32>, vector<8x8xf32> -> vector<8x8xf32>
    %137 = vector.broadcast %113 : vector<1x8xf32> to vector<8x8xf32>
    %138 = arith.addf %136, %137 : vector<8x8xf32>
    %cst_50 = arith.constant dense<0xFF800000> : vector<8xf32>
    %139 = vector.multi_reduction <maximumf>, %138, %cst_50 [1] : vector<8x8xf32> to vector<8xf32>
    %140 = vector.shape_cast %139 : vector<8xf32> to vector<8x1xf32>
    %141 = vector.broadcast %140 : vector<8x1xf32> to vector<8x8xf32>
    %142 = arith.subf %138, %141 : vector<8x8xf32>
    %143 = math.exp %142 : vector<8x8xf32>
    %cst_51 = arith.constant dense<0.000000e+00> : vector<8xf32>
    %144 = vector.multi_reduction <add>, %143, %cst_51 [1] : vector<8x8xf32> to vector<8xf32>
    %145 = vector.shape_cast %144 : vector<8xf32> to vector<8x1xf32>
    %146 = tpu.reciprocal %145 : vector<8x1xf32> -> vector<8x1xf32>
    %147 = vector.broadcast %146 : vector<8x1xf32> to vector<8x8xf32>
    %148 = arith.mulf %143, %147 : vector<8x8xf32>
    %cst_52 = arith.constant dense<0.000000e+00> : vector<8x8xf32>
    %149 = tpu.matmul %148, %135, %cst_52 {dimension_numbers = #tpu.dot_dimension_numbers<[1], [0], [0], [1], [0, 0, 1, 1], [], []>} : vector<8x8xf32>, vector<8x8xf32>, vector<8x8xf32> -> vector<8x8xf32>
    %150 = vector.extract_strided_slice %6 {offsets = [8, 0], sizes = [8, 32], strides = [1, 1]} : vector<32x32xf32> to vector<8x32xf32>
    %cst_53 = arith.constant dense<0.000000e+00> : vector<8x32xf32>
    %151 = tpu.matmul %149, %150, %cst_53 {dimension_numbers = #tpu.dot_dimension_numbers<[1], [0], [0], [1], [0, 0, 1, 1], [], []>} : vector<8x8xf32>, vector<8x32xf32>, vector<8x32xf32> -> vector<8x32xf32>
    %152 = arith.addf %132, %151 : vector<8x32xf32>
    %153 = vector.extract_strided_slice %22 {offsets = [8, 0], sizes = [8, 8], strides = [1, 1]} : vector<16x16xf32> to vector<8x8xf32>
    %154 = vector.extract_strided_slice %28 {offsets = [8, 0], sizes = [8, 8], strides = [1, 1]} : vector<16x16xf32> to vector<8x8xf32>
    %155 = vector.extract_strided_slice %12 {offsets = [8, 16], sizes = [8, 8], strides = [1, 1]} : vector<16x32xf32> to vector<8x8xf32>
    %cst_54 = arith.constant dense<0.000000e+00> : vector<8x8xf32>
    %156 = tpu.matmul %153, %154, %cst_54 {dimension_numbers = #tpu.dot_dimension_numbers<[1], [1], [0], [0], [0, 0, 1, 0], [], []>} : vector<8x8xf32>, vector<8x8xf32>, vector<8x8xf32> -> vector<8x8xf32>
    %157 = vector.broadcast %113 : vector<1x8xf32> to vector<8x8xf32>
    %158 = arith.addf %156, %157 : vector<8x8xf32>
    %cst_55 = arith.constant dense<0xFF800000> : vector<8xf32>
    %159 = vector.multi_reduction <maximumf>, %158, %cst_55 [1] : vector<8x8xf32> to vector<8xf32>
    %160 = vector.shape_cast %159 : vector<8xf32> to vector<8x1xf32>
    %161 = vector.broadcast %160 : vector<8x1xf32> to vector<8x8xf32>
    %162 = arith.subf %158, %161 : vector<8x8xf32>
    %163 = math.exp %162 : vector<8x8xf32>
    %cst_56 = arith.constant dense<0.000000e+00> : vector<8xf32>
    %164 = vector.multi_reduction <add>, %163, %cst_56 [1] : vector<8x8xf32> to vector<8xf32>
    %165 = vector.shape_cast %164 : vector<8xf32> to vector<8x1xf32>
    %166 = tpu.reciprocal %165 : vector<8x1xf32> -> vector<8x1xf32>
    %167 = vector.broadcast %166 : vector<8x1xf32> to vector<8x8xf32>
    %168 = arith.mulf %163, %167 : vector<8x8xf32>
    %cst_57 = arith.constant dense<0.000000e+00> : vector<8x8xf32>
    %169 = tpu.matmul %168, %155, %cst_57 {dimension_numbers = #tpu.dot_dimension_numbers<[1], [0], [0], [1], [0, 0, 1, 1], [], []>} : vector<8x8xf32>, vector<8x8xf32>, vector<8x8xf32> -> vector<8x8xf32>
    %170 = vector.extract_strided_slice %6 {offsets = [16, 0], sizes = [8, 32], strides = [1, 1]} : vector<32x32xf32> to vector<8x32xf32>
    %cst_58 = arith.constant dense<0.000000e+00> : vector<8x32xf32>
    %171 = tpu.matmul %169, %170, %cst_58 {dimension_numbers = #tpu.dot_dimension_numbers<[1], [0], [0], [1], [0, 0, 1, 1], [], []>} : vector<8x8xf32>, vector<8x32xf32>, vector<8x32xf32> -> vector<8x32xf32>
    %172 = arith.addf %152, %171 : vector<8x32xf32>
    %173 = vector.extract_strided_slice %22 {offsets = [8, 8], sizes = [8, 8], strides = [1, 1]} : vector<16x16xf32> to vector<8x8xf32>
    %174 = vector.extract_strided_slice %28 {offsets = [8, 8], sizes = [8, 8], strides = [1, 1]} : vector<16x16xf32> to vector<8x8xf32>
    %175 = vector.extract_strided_slice %12 {offsets = [8, 24], sizes = [8, 8], strides = [1, 1]} : vector<16x32xf32> to vector<8x8xf32>
    %cst_59 = arith.constant dense<0.000000e+00> : vector<8x8xf32>
    %176 = tpu.matmul %173, %174, %cst_59 {dimension_numbers = #tpu.dot_dimension_numbers<[1], [1], [0], [0], [0, 0, 1, 0], [], []>} : vector<8x8xf32>, vector<8x8xf32>, vector<8x8xf32> -> vector<8x8xf32>
    %177 = vector.broadcast %113 : vector<1x8xf32> to vector<8x8xf32>
    %178 = arith.addf %176, %177 : vector<8x8xf32>
    %cst_60 = arith.constant dense<0xFF800000> : vector<8xf32>
    %179 = vector.multi_reduction <maximumf>, %178, %cst_60 [1] : vector<8x8xf32> to vector<8xf32>
    %180 = vector.shape_cast %179 : vector<8xf32> to vector<8x1xf32>
    %181 = vector.broadcast %180 : vector<8x1xf32> to vector<8x8xf32>
    %182 = arith.subf %178, %181 : vector<8x8xf32>
    %183 = math.exp %182 : vector<8x8xf32>
    %cst_61 = arith.constant dense<0.000000e+00> : vector<8xf32>
    %184 = vector.multi_reduction <add>, %183, %cst_61 [1] : vector<8x8xf32> to vector<8xf32>
    %185 = vector.shape_cast %184 : vector<8xf32> to vector<8x1xf32>
    %186 = tpu.reciprocal %185 : vector<8x1xf32> -> vector<8x1xf32>
    %187 = vector.broadcast %186 : vector<8x1xf32> to vector<8x8xf32>
    %188 = arith.mulf %183, %187 : vector<8x8xf32>
    %cst_62 = arith.constant dense<0.000000e+00> : vector<8x8xf32>
    %189 = tpu.matmul %188, %175, %cst_62 {dimension_numbers = #tpu.dot_dimension_numbers<[1], [0], [0], [1], [0, 0, 1, 1], [], []>} : vector<8x8xf32>, vector<8x8xf32>, vector<8x8xf32> -> vector<8x8xf32>
    %190 = vector.extract_strided_slice %6 {offsets = [24, 0], sizes = [8, 32], strides = [1, 1]} : vector<32x32xf32> to vector<8x32xf32>
    %cst_63 = arith.constant dense<0.000000e+00> : vector<8x32xf32>
    %191 = tpu.matmul %189, %190, %cst_63 {dimension_numbers = #tpu.dot_dimension_numbers<[1], [0], [0], [1], [0, 0, 1, 1], [], []>} : vector<8x8xf32>, vector<8x32xf32>, vector<8x32xf32> -> vector<8x32xf32>
    %192 = arith.addf %172, %191 : vector<8x32xf32>
    %193 = tpu.concatenate %192, %129, %148, %168, %188 in 1 : vector<8x32xf32>, vector<8x8xf32>, vector<8x8xf32>, vector<8x8xf32>, vector<8x8xf32> -> vector<8x64xf32>
    %c1 = arith.constant 1 : index
    %c0_64 = arith.constant 0 : index
    %c0_65 = arith.constant 0 : index
    %194 = vector.load %arg11[%c1, %c0_64, %c0_65] : memref<2x8x64xf32, #tpu.memory_space<vmem>>, vector<1x8x64xf32>
    %195 = vector.shape_cast %194 : vector<1x8x64xf32> to vector<8x64xf32>
    %196 = vector.shape_cast %193 : vector<8x64xf32> to vector<1x8x64xf32>
    tpu.vector_store %arg11[%c1, %c0_64, %c0_65], %196 {strides = array<i32>} : memref<2x8x64xf32, #tpu.memory_space<vmem>>, vector<1x8x64xf32>,
    return
  }
  func.func @transform_0(%arg0: i32) -> (i32, i32) {
    %c0_i32 = arith.constant 0 : i32
    %c0_i32_0 = arith.constant 0 : i32
    %c0_i32_1 = arith.constant 0 : i32
    return %c0_i32, %c0_i32_0 : i32, i32
  }
  func.func @transform_1(%arg0: i32) -> (i32, i32) {
    %c0_i32 = arith.constant 0 : i32
    %c0_i32_0 = arith.constant 0 : i32
    %c0_i32_1 = arith.constant 0 : i32
    return %c0_i32, %c0_i32_0 : i32, i32
  }
  func.func @transform_2(%arg0: i32) -> (i32, i32) {
    %c0_i32 = arith.constant 0 : i32
    %c0_i32_0 = arith.constant 0 : i32
    %c0_i32_1 = arith.constant 0 : i32
    return %c0_i32, %c0_i32_0 : i32, i32
  }
  func.func @transform_3(%arg0: i32) -> (i32, i32) {
    %c0_i32 = arith.constant 0 : i32
    %c0_i32_0 = arith.constant 0 : i32
    %c0_i32_1 = arith.constant 0 : i32
    return %c0_i32, %c0_i32_0 : i32, i32
  }
  func.func @transform_4(%arg0: i32) -> (i32, i32) {
    %c0_i32 = arith.constant 0 : i32
    %c0_i32_0 = arith.constant 0 : i32
    %c0_i32_1 = arith.constant 0 : i32
    return %c0_i32, %c0_i32_0 : i32, i32
  }
  func.func @transform_5(%arg0: i32) -> (i32, i32) {
    %c0_i32 = arith.constant 0 : i32
    %c0_i32_0 = arith.constant 0 : i32
    %c0_i32_1 = arith.constant 0 : i32
    return %c0_i32, %c0_i32_0 : i32, i32
  }
  func.func @transform_6(%arg0: i32) -> (i32, i32) {
    %c0_i32 = arith.constant 0 : i32
    %c0_i32_0 = arith.constant 0 : i32
    %c0_i32_1 = arith.constant 0 : i32
    return %c0_i32, %c0_i32_0 : i32, i32
  }
  func.func @transform_7(%arg0: i32) -> (i32, i32) {
    %c0_i32 = arith.constant 0 : i32
    %c0_i32_0 = arith.constant 0 : i32
    %c0_i32_1 = arith.constant 0 : i32
    return %c0_i32, %c0_i32_0 : i32, i32
  }
  func.func @transform_8(%arg0: i32) -> (i32, i32) {
    %c0_i32 = arith.constant 0 : i32
    %c0_i32_0 = arith.constant 0 : i32
    %c0_i32_1 = arith.constant 0 : i32
    return %c0_i32, %c0_i32_0 : i32, i32
  }
  func.func @transform_9(%arg0: i32) -> (i32, i32) {
    %c0_i32 = arith.constant 0 : i32
    %c0_i32_0 = arith.constant 0 : i32
    %c0_i32_1 = arith.constant 0 : i32
    return %c0_i32, %c0_i32_0 : i32, i32
  }
  func.func @transform_10(%arg0: i32) -> (i32, i32, i32) {
    %c0_i32 = arith.constant 0 : i32
    %c0_i32_0 = arith.constant 0 : i32
    %c0_i32_1 = arith.constant 0 : i32
    %c0_i32_2 = arith.constant 0 : i32
    return %c0_i32, %c0_i32_0, %c0_i32_1 : i32, i32, i32
  }
}

</mosaic_0001>

<llo_original>
// kernel: multi_head_attention.1
$region0: #{multi_head_attention.1}
  #allocation0 [shape = 'u32[]', space=smem, size = 0x4, offset = 0x4, fixed_abs, tag = 'smem constant byte address 0x4 - core index']
  #allocation1 [shape = 'u32[144,128]{1,0:T(1,128)}', space=vmem, size = 0x12000, scoped, tag = 'internal scratch']
  %s0 = inlined_call_operand.hbm [shape: f32[16,32], index: 0, kind: input, shape index: {}]
  %s1 = inlined_call_operand.hbm [shape: f32[16,32], index: 1, kind: input, shape index: {}]
  %s2 = inlined_call_operand.hbm [shape: f32[16,32], index: 2, kind: input, shape index: {}]
  %s3 = inlined_call_operand.hbm [shape: f32[16,16], index: 3, kind: input, shape index: {}]
  %s4 = inlined_call_operand.vmem [shape: f32[16,16], index: 4, kind: input, shape index: {}]
  %s5 = inlined_call_operand.vmem [shape: f32[2,8], index: 5, kind: input, shape index: {}]
  %s6 = inlined_call_operand.vmem [shape: f32[32,32], index: 6, kind: input, shape index: {}]
  %s7 = inlined_call_operand.hbm [shape: f32[32,32], index: 7, kind: input, shape index: {}]
  %s8 = inlined_call_operand.hbm [shape: f32[32,32], index: 8, kind: input, shape index: {}]
  %s9 = inlined_call_operand.hbm [shape: f32[32,32], index: 9, kind: input, shape index: {}]
  %s10 = inlined_call_operand.vmem [shape: f32[2,8,64], index: 10, kind: output, shape index: {}]
  %s11 = sld [smem:[#allocation0]]
  $region78: #{multi_head_attention.1} parent=0
    _
  %s13 = ssub.s32 1, %s11
  %s14 = scalar_select 0, %s13, %s11
  $region1: #{multi_head_attention.1} parent=0
    #allocation2 [shape = 'u8[8192]{0}', space=vmem, size = 0x2000, scoped, tag = 'input window, operand 0, single buffered']
    #allocation3 [shape = 's32[1]{0}', space=sflag, size = 0x4, scoped, tag = 'scoped memory for multi_head_attention.1']
    #allocation4 [shape = 'u8[8192]{0}', space=vmem, size = 0x2000, scoped, tag = 'input window, operand 1, single buffered']
    #allocation5 [shape = 's32[1]{0}', space=sflag, size = 0x4, scoped, tag = 'scoped memory for multi_head_attention.1']
    #allocation6 [shape = 'u8[8192]{0}', space=vmem, size = 0x2000, scoped, tag = 'input window, operand 2, single buffered']
    #allocation7 [shape = 'u8[8192]{0}', space=vmem, size = 0x2000, scoped, tag = 'input window, operand 3, single buffered']
    #allocation8 [shape = 's32[1]{0}', space=sflag, size = 0x4, scoped, tag = 'scoped memory for multi_head_attention.1']
    #allocation9 [shape = 'u8[16384]{0}', space=vmem, size = 0x4000, scoped, tag = 'input window, operand 7, single buffered']
    #allocation10 [shape = 'u8[16384]{0}', space=vmem, size = 0x4000, scoped, tag = 'input window, operand 8, single buffered']
    #allocation11 [shape = 's32[1]{0}', space=sflag, size = 0x4, scoped, tag = 'scoped memory for multi_head_attention.1']
    #allocation12 [shape = 'u8[16384]{0}', space=vmem, size = 0x4000, scoped, tag = 'input window, operand 9, single buffered']
    %15 = vsyncpa [#allocation3], 0
    %16 = vsyncpa [#allocation5], 0
    %17 = vsyncpa [#allocation8], 0
    %18 = vsyncpa [#allocation11], 0
    // Predicated region
    $region2: #{multi_head_attention.1} parent=1 // pred_check
      _
    $region3: #{multi_head_attention.1} parent=1 // pred_check_branch
      %20 = sbr.rel (0) target = $region5
    $region4: #{multi_head_attention.1} parent=1 // pred_region
      %s22 = ssub.s32 256, 256
      %23 = vsyncadd [#allocation3], %s22
      %s24 = sshll.u32 [#allocation2], 4
      %s25 = int_to_ptr.vmem [resolvable:$true] %s24
      %30 = dma.hbm_to_vmem [thread:$0]  %s0, 256, %s25, [#allocation3], 128, 128, 8
    $region5: #{multi_head_attention.1} parent=1 // pred_fallthru
      _
    // Predicated region
    $region6: #{multi_head_attention.1} parent=1 // pred_check
      _
    $region7: #{multi_head_attention.1} parent=1 // pred_check_branch
      %32 = sbr.rel (0) target = $region9
    $region8: #{multi_head_attention.1} parent=1 // pred_region
      %s34 = ssub.s32 256, 256
      %35 = vsyncadd [#allocation5], %s34
      %s36 = sshll.u32 [#allocation4], 4
      %s37 = int_to_ptr.vmem [resolvable:$true] %s36
      %42 = dma.hbm_to_vmem [thread:$0]  %s1, 256, %s37, [#allocation5], 128, 128, 8
    $region9: #{multi_head_attention.1} parent=1 // pred_fallthru
      _
    // Predicated region
    $region10: #{multi_head_attention.1} parent=1 // pred_check
      _
    $region11: #{multi_head_attention.1} parent=1 // pred_check_branch
      %44 = sbr.rel (0) target = $region13
    $region12: #{multi_head_attention.1} parent=1 // pred_region
      %s46 = ssub.s32 256, 256
      %47 = vsyncadd [#allocation5], %s46
      %s48 = sshll.u32 [#allocation6], 4
      %s49 = int_to_ptr.vmem [resolvable:$true] %s48
      %54 = dma.hbm_to_vmem [thread:$0]  %s2, 256, %s49, [#allocation5], 128, 128, 8
    $region13: #{multi_head_attention.1} parent=1 // pred_fallthru
      _
    // Predicated region
    $region14: #{multi_head_attention.1} parent=1 // pred_check
      _
    $region15: #{multi_head_attention.1} parent=1 // pred_check_branch
      %56 = sbr.rel (0) target = $region17
    $region16: #{multi_head_attention.1} parent=1 // pred_region
      %s58 = ssub.s32 256, 256
      %59 = vsyncadd [#allocation8], %s58
      %s60 = sshll.u32 [#allocation7], 4
      %s61 = int_to_ptr.vmem [resolvable:$true] %s60
      %66 = dma.hbm_to_vmem [thread:$0]  %s3, 256, %s61, [#allocation8], 128, 128, 8
    $region17: #{multi_head_attention.1} parent=1 // pred_fallthru
      _
    // Predicated region
    $region18: #{multi_head_attention.1} parent=1 // pred_check
      _
    $region19: #{multi_head_attention.1} parent=1 // pred_check_branch
      %68 = sbr.rel (0) target = $region21
    $region20: #{multi_head_attention.1} parent=1 // pred_region
      _
    $region21: #{multi_head_attention.1} parent=1 // pred_fallthru
      _
    // Predicated region
    $region22: #{multi_head_attention.1} parent=1 // pred_check
      _
    $region23: #{multi_head_attention.1} parent=1 // pred_check_branch
      %70 = sbr.rel (0) target = $region25
    $region24: #{multi_head_attention.1} parent=1 // pred_region
      _
    $region25: #{multi_head_attention.1} parent=1 // pred_fallthru
      _
    // Predicated region
    $region26: #{multi_head_attention.1} parent=1 // pred_check
      _
    $region27: #{multi_head_attention.1} parent=1 // pred_check_branch
      %72 = sbr.rel (0) target = $region29
    $region28: #{multi_head_attention.1} parent=1 // pred_region
      _
    $region29: #{multi_head_attention.1} parent=1 // pred_fallthru
      _
    // Predicated region
    $region30: #{multi_head_attention.1} parent=1 // pred_check
      _
    $region31: #{multi_head_attention.1} parent=1 // pred_check_branch
      %74 = sbr.rel (0) target = $region33
    $region32: #{multi_head_attention.1} parent=1 // pred_region
      %s76 = ssub.s32 512, 512
      %77 = vsyncadd [#allocation8], %s76
      %s78 = sshll.u32 [#allocation9], 4
      %s79 = int_to_ptr.vmem [resolvable:$true] %s78
      %84 = dma.hbm_to_vmem [thread:$0]  %s7, 512, %s79, [#allocation8], 128, 128, 8
    $region33: #{multi_head_attention.1} parent=1 // pred_fallthru
      _
    // Predicated region
    $region34: #{multi_head_attention.1} parent=1 // pred_check
      _
    $region35: #{multi_head_attention.1} parent=1 // pred_check_branch
      %86 = sbr.rel (0) target = $region37
    $region36: #{multi_head_attention.1} parent=1 // pred_region
      %s88 = ssub.s32 512, 512
      %89 = vsyncadd [#allocation11], %s88
      %s90 = sshll.u32 [#allocation10], 4
      %s91 = int_to_ptr.vmem [resolvable:$true] %s90
      %96 = dma.hbm_to_vmem [thread:$0]  %s8, 512, %s91, [#allocation11], 128, 128, 8
    $region37: #{multi_head_attention.1} parent=1 // pred_fallthru
      _
    // Predicated region
    $region38: #{multi_head_attention.1} parent=1 // pred_check
      _
    $region39: #{multi_head_attention.1} parent=1 // pred_check_branch
      %98 = sbr.rel (0) target = $region41
    $region40: #{multi_head_attention.1} parent=1 // pred_region
      %s100 = ssub.s32 512, 512
      %101 = vsyncadd [#allocation11], %s100
      %s102 = sshll.u32 [#allocation12], 4
      %s103 = int_to_ptr.vmem [resolvable:$true] %s102
      %108 = dma.hbm_to_vmem [thread:$0]  %s9, 512, %s103, [#allocation11], 128, 128, 8
    $region41: #{multi_head_attention.1} parent=1 // pred_fallthru
      _
    // Predicated region
    $region42: #{multi_head_attention.1} parent=1 // pred_check
      _
    $region43: #{multi_head_attention.1} parent=1 // pred_check_branch
      %110 = sbr.rel (0) target = $region45
    $region44: #{multi_head_attention.1} parent=1 // pred_region
      %111 = dma.done [#allocation3], 256
    $region45: #{multi_head_attention.1} parent=1 // pred_fallthru
      _
    // Predicated region
    $region46: #{multi_head_attention.1} parent=1 // pred_check
      _
    $region47: #{multi_head_attention.1} parent=1 // pred_check_branch
      %113 = sbr.rel (0) target = $region49
    $region48: #{multi_head_attention.1} parent=1 // pred_region
      %114 = dma.done [#allocation5], 256
    $region49: #{multi_head_attention.1} parent=1 // pred_fallthru
      _
    // Predicated region
    $region50: #{multi_head_attention.1} parent=1 // pred_check
      _
    $region51: #{multi_head_attention.1} parent=1 // pred_check_branch
      %116 = sbr.rel (0) target = $region53
    $region52: #{multi_head_attention.1} parent=1 // pred_region
      %117 = dma.done [#allocation5], 256
    $region53: #{multi_head_attention.1} parent=1 // pred_fallthru
      _
    // Predicated region
    $region54: #{multi_head_attention.1} parent=1 // pred_check
      _
    $region55: #{multi_head_attention.1} parent=1 // pred_check_branch
      %119 = sbr.rel (0) target = $region57
    $region56: #{multi_head_attention.1} parent=1 // pred_region
      %120 = dma.done [#allocation8], 256
    $region57: #{multi_head_attention.1} parent=1 // pred_fallthru
      _
    // Predicated region
    $region58: #{multi_head_attention.1} parent=1 // pred_check
      _
    $region59: #{multi_head_attention.1} parent=1 // pred_check_branch
      %122 = sbr.rel (0) target = $region61
    $region60: #{multi_head_attention.1} parent=1 // pred_region
      %123 = dma.done [#allocation8], 512
    $region61: #{multi_head_attention.1} parent=1 // pred_fallthru
      _
    // Predicated region
    $region62: #{multi_head_attention.1} parent=1 // pred_check
      _
    $region63: #{multi_head_attention.1} parent=1 // pred_check_branch
      %125 = sbr.rel (0) target = $region65
    $region64: #{multi_head_attention.1} parent=1 // pred_region
      %126 = dma.done [#allocation11], 512
    $region65: #{multi_head_attention.1} parent=1 // pred_fallthru
      _
    // Predicated region
    $region66: #{multi_head_attention.1} parent=1 // pred_check
      _
    $region67: #{multi_head_attention.1} parent=1 // pred_check_branch
      %128 = sbr.rel (0) target = $region69
    $region68: #{multi_head_attention.1} parent=1 // pred_region
      %129 = dma.done [#allocation11], 512
    $region69: #{multi_head_attention.1} parent=1 // pred_fallthru
      _
    %v130 = vld [vmem:[#allocation2] sm:$0xff]
    %v131 = vld [vmem:[#allocation2 + $0x8] sm:$0xff]
    %v132 = vld [vmem:[#allocation4] sm:$0xff]
    %v133 = vld [vmem:[#allocation4 + $0x8] sm:$0xff]
    %v134 = vld [vmem:[#allocation6] sm:$0xff]
    %v135 = vld [vmem:[#allocation6 + $0x8] sm:$0xff]
    %v136 = vld [vmem:[#allocation7] sm:$0xff]
    %v137 = vld [vmem:[#allocation7 + $0x8] sm:$0xff]
    %v138 = vld [vmem:[%s4] sm:$0xff]
    %v139 = vld [vmem:[%s4 + $0x8] sm:$0xff]
    %v140 = vld [vmem:[%s5] sm:$0x3]
    %v141 = vld [vmem:[#allocation12] sm:$0xff]
    %v142 = vld [vmem:[#allocation12 + $0x8] sm:$0xff]
    %v143 = vld [vmem:[#allocation12 + $0x10] sm:$0xff]
    %v144 = vld [vmem:[#allocation12 + $0x18] sm:$0xff]
    %v145 = vld [vmem:[%s6] sm:$0xff]
    %v146 = vld [vmem:[%s6 + $0x8] sm:$0xff]
    %v147 = vld [vmem:[%s6 + $0x10] sm:$0xff]
    %v148 = vld [vmem:[%s6 + $0x18] sm:$0xff]
    %vm149 = vcmask 261120
    %v151 = vsel %vm149, %v130, 0
    %v154 = vsel %vm149, %v131, 0
    %156 = vmatprep.subr.mxu0 0.0
    %157 = vmatpush1.msra.mxu0 %v145
    %158 = vmatprep.subr.mxu0 0.0
    %159 = vmatpush1.msra.mxu0 %v146
    %160 = vmatprep.subr.mxu0 0.0
    %161 = vmatpush1.msra.mxu0 %v147
    %162 = vmatprep.subr.mxu0 0.0
    %163 = vmatpush1.msra.mxu0 %v148
    %164 = vmatprep.subr.mxu0 0.0
    %165 = vmatpush1.msra.mxu0 0.0
    %166 = vmatprep.subr.mxu0 0.0
    %167 = vmatpush1.msra.mxu0 0.0
    %168 = vmatprep.subr.mxu0 0.0
    %169 = vmatpush1.msra.mxu0 0.0
    %170 = vmatprep.subr.mxu0 0.0
    %171 = vmatpush1.msra.mxu0 0.0
    %172 = vmatprep.subr.mxu0 0.0
    %173 = vmatpush1.msra.mxu0 0.0
    %174 = vmatprep.subr.mxu0 0.0
    %175 = vmatpush1.msra.mxu0 0.0
    %176 = vmatprep.subr.mxu0 0.0
    %177 = vmatpush1.msra.mxu0 0.0
    %178 = vmatprep.subr.mxu0 0.0
    %179 = vmatpush1.msra.mxu0 0.0
    %180 = vmatprep.subr.mxu0 0.0
    %181 = vmatpush1.msra.mxu0 0.0
    %182 = vmatprep.subr.mxu0 0.0
    %183 = vmatpush1.msra.mxu0 0.0
    %184 = vmatprep.subr.mxu0 0.0
    %185 = vmatpush1.msra.mxu0 0.0
    %186 = vmatprep.subr.mxu0 0.0
    %187 = vmatpush1.msra.mxu0 0.0
    %188 = vmatprep.subr.mxu0 0.0
    %189 = vmatpush1.msra.mxu0 0.0
    %190 = vmatprep.subr.mxu0 0.0
    %191 = vmatpush1.msra.mxu0 0.0
    %192 = vmatprep.subr.mxu0 0.0
    %193 = vmatpush1.msra.mxu0 0.0
    %194 = vmatprep.subr.mxu0 0.0
    %195 = vmatpush1.msra.mxu0 0.0
    %196 = vmatprep.subr.mxu0 0.0
    %197 = vmatpush1.msra.mxu0 0.0
    %198 = vmatprep.subr.mxu0 0.0
    %199 = vmatpush1.msra.mxu0 0.0
    %200 = vmatprep.subr.mxu0 0.0
    %201 = vmatpush1.msra.mxu0 0.0
    %202 = vmatprep.subr.mxu0 0.0
    %203 = vmatpush1.msra.mxu0 0.0
    %204 = vmatprep.subr.mxu0 0.0
    %205 = vmatpush1.msra.mxu0 0.0
    %206 = vmatprep.subr.mxu0 0.0
    %207 = vmatpush1.msra.mxu0 0.0
    %208 = vmatprep.subr.mxu0 0.0
    %209 = vmatpush1.msra.mxu0 0.0
    %210 = vmatprep.subr.mxu0 0.0
    %211 = vmatpush1.msra.mxu0 0.0
    %212 = vmatprep.subr.mxu0 0.0
    %213 = vmatpush1.msra.mxu0 0.0
    %214 = vmatprep.subr.mxu0 0.0
    %215 = vmatpush1.msra.mxu0 0.0
    %216 = vmatprep.subr.mxu0 0.0
    %217 = vmatpush1.msra.mxu0 0.0
    %218 = vmatprep.subr.mxu0 0.0
    %219 = vmatpush1.msra.mxu0 0.0
    %220 = vmatprep.mubr.f32.mxu0 0.0
    %221 = vmatmul.mubr.f32.gmra.mrb[0].mxu0 %v151
    %v222 = vpop.f32.mrb[0].mxu0
    %v223 = vadd.f32 0.0, %v222
    %v224 = vpop.f32.mrb[0].mxu0
    %225 = vmatprep.mubr.f32.mxu0 0.0
    %226 = vmatmul.mubr.f32.gmra.mrb[0].mxu0 %v154
    %v227 = vpop.f32.mrb[0].mxu0
    %v228 = vadd.f32 0.0, %v227
    %v229 = vpop.f32.mrb[0].mxu0
    %230 = vdwg.mxu0
    %v231 = vld [vmem:[#allocation9] sm:$0xff]
    %v232 = vld [vmem:[#allocation9 + $0x8] sm:$0xff]
    %v233 = vld [vmem:[#allocation9 + $0x10] sm:$0xff]
    %v234 = vld [vmem:[#allocation9 + $0x18] sm:$0xff]
    %v236 = vsel %vm149, %v132, 0
    %v239 = vsel %vm149, %v133, 0
    %241 = vmatprep.subr.mxu0 0.0
    %242 = vmatpush1.msra.mxu0 %v231
    %243 = vmatprep.subr.mxu0 0.0
    %244 = vmatpush1.msra.mxu0 %v232
    %245 = vmatprep.subr.mxu0 0.0
    %246 = vmatpush1.msra.mxu0 %v233
    %247 = vmatprep.subr.mxu0 0.0
    %248 = vmatpush1.msra.mxu0 %v234
    %249 = vmatprep.subr.mxu0 0.0
    %250 = vmatpush1.msra.mxu0 0.0
    %251 = vmatprep.subr.mxu0 0.0
    %252 = vmatpush1.msra.mxu0 0.0
    %253 = vmatprep.subr.mxu0 0.0
    %254 = vmatpush1.msra.mxu0 0.0
    %255 = vmatprep.subr.mxu0 0.0
    %256 = vmatpush1.msra.mxu0 0.0
    %257 = vmatprep.subr.mxu0 0.0
    %258 = vmatpush1.msra.mxu0 0.0
    %259 = vmatprep.subr.mxu0 0.0
    %260 = vmatpush1.msra.mxu0 0.0
    %261 = vmatprep.subr.mxu0 0.0
    %262 = vmatpush1.msra.mxu0 0.0
    %263 = vmatprep.subr.mxu0 0.0
    %264 = vmatpush1.msra.mxu0 0.0
    %265 = vmatprep.subr.mxu0 0.0
    %266 = vmatpush1.msra.mxu0 0.0
    %267 = vmatprep.subr.mxu0 0.0
    %268 = vmatpush1.msra.mxu0 0.0
    %269 = vmatprep.subr.mxu0 0.0
    %270 = vmatpush1.msra.mxu0 0.0
    %271 = vmatprep.subr.mxu0 0.0
    %272 = vmatpush1.msra.mxu0 0.0
    %273 = vmatprep.subr.mxu0 0.0
    %274 = vmatpush1.msra.mxu0 0.0
    %275 = vmatprep.subr.mxu0 0.0
    %276 = vmatpush1.msra.mxu0 0.0
    %277 = vmatprep.subr.mxu0 0.0
    %278 = vmatpush1.msra.mxu0 0.0
    %279 = vmatprep.subr.mxu0 0.0
    %280 = vmatpush1.msra.mxu0 0.0
    %281 = vmatprep.subr.mxu0 0.0
    %282 = vmatpush1.msra.mxu0 0.0
    %283 = vmatprep.subr.mxu0 0.0
    %284 = vmatpush1.msra.mxu0 0.0
    %285 = vmatprep.subr.mxu0 0.0
    %286 = vmatpush1.msra.mxu0 0.0
    %287 = vmatprep.subr.mxu0 0.0
    %288 = vmatpush1.msra.mxu0 0.0
    %289 = vmatprep.subr.mxu0 0.0
    %290 = vmatpush1.msra.mxu0 0.0
    %291 = vmatprep.subr.mxu0 0.0
    %292 = vmatpush1.msra.mxu0 0.0
    %293 = vmatprep.subr.mxu0 0.0
    %294 = vmatpush1.msra.mxu0 0.0
    %295 = vmatprep.subr.mxu0 0.0
    %296 = vmatpush1.msra.mxu0 0.0
    %297 = vmatprep.subr.mxu0 0.0
    %298 = vmatpush1.msra.mxu0 0.0
    %299 = vmatprep.subr.mxu0 0.0
    %300 = vmatpush1.msra.mxu0 0.0
    %301 = vmatprep.subr.mxu0 0.0
    %302 = vmatpush1.msra.mxu0 0.0
    %303 = vmatprep.subr.mxu0 0.0
    %304 = vmatpush1.msra.mxu0 0.0
    %305 = vmatprep.mubr.f32.mxu0 0.0
    %306 = vmatmul.mubr.f32.gmra.mrb[0].mxu0 %v236
    %v307 = vpop.f32.mrb[0].mxu0
    %v308 = vadd.f32 0.0, %v307
    %v309 = vpop.f32.mrb[0].mxu0
    %310 = vmatprep.mubr.f32.mxu0 0.0
    %311 = vmatmul.mubr.f32.gmra.mrb[0].mxu0 %v239
    %v312 = vpop.f32.mrb[0].mxu0
    %v313 = vadd.f32 0.0, %v312
    %v314 = vpop.f32.mrb[0].mxu0
    %315 = vdwg.mxu0
    %v316 = vld [vmem:[#allocation10] sm:$0xff]
    %v317 = vld [vmem:[#allocation10 + $0x8] sm:$0xff]
    %v318 = vld [vmem:[#allocation10 + $0x10] sm:$0xff]
    %v319 = vld [vmem:[#allocation10 + $0x18] sm:$0xff]
    %v321 = vsel %vm149, %v134, 0
    %v324 = vsel %vm149, %v135, 0
    %326 = vmatprep.subr.mxu0 0.0
    %327 = vmatpush1.msra.mxu0 %v316
    %328 = vmatprep.subr.mxu0 0.0
    %329 = vmatpush1.msra.mxu0 %v317
    %330 = vmatprep.subr.mxu0 0.0
    %331 = vmatpush1.msra.mxu0 %v318
    %332 = vmatprep.subr.mxu0 0.0
    %333 = vmatpush1.msra.mxu0 %v319
    %334 = vmatprep.subr.mxu0 0.0
    %335 = vmatpush1.msra.mxu0 0.0
    %336 = vmatprep.subr.mxu0 0.0
    %337 = vmatpush1.msra.mxu0 0.0
    %338 = vmatprep.subr.mxu0 0.0
    %339 = vmatpush1.msra.mxu0 0.0
    %340 = vmatprep.subr.mxu0 0.0
    %341 = vmatpush1.msra.mxu0 0.0
    %342 = vmatprep.subr.mxu0 0.0
    %343 = vmatpush1.msra.mxu0 0.0
    %344 = vmatprep.subr.mxu0 0.0
    %345 = vmatpush1.msra.mxu0 0.0
    %346 = vmatprep.subr.mxu0 0.0
    %347 = vmatpush1.msra.mxu0 0.0
    %348 = vmatprep.subr.mxu0 0.0
    %349 = vmatpush1.msra.mxu0 0.0
    %350 = vmatprep.subr.mxu0 0.0
    %351 = vmatpush1.msra.mxu0 0.0
    %352 = vmatprep.subr.mxu0 0.0
    %353 = vmatpush1.msra.mxu0 0.0
    %354 = vmatprep.subr.mxu0 0.0
    %355 = vmatpush1.msra.mxu0 0.0
    %356 = vmatprep.subr.mxu0 0.0
    %357 = vmatpush1.msra.mxu0 0.0
    %358 = vmatprep.subr.mxu0 0.0
    %359 = vmatpush1.msra.mxu0 0.0
    %360 = vmatprep.subr.mxu0 0.0
    %361 = vmatpush1.msra.mxu0 0.0
    %362 = vmatprep.subr.mxu0 0.0
    %363 = vmatpush1.msra.mxu0 0.0
    %364 = vmatprep.subr.mxu0 0.0
    %365 = vmatpush1.msra.mxu0 0.0
    %366 = vmatprep.subr.mxu0 0.0
    %367 = vmatpush1.msra.mxu0 0.0
    %368 = vmatprep.subr.mxu0 0.0
    %369 = vmatpush1.msra.mxu0 0.0
    %370 = vmatprep.subr.mxu0 0.0
    %371 = vmatpush1.msra.mxu0 0.0
    %372 = vmatprep.subr.mxu0 0.0
    %373 = vmatpush1.msra.mxu0 0.0
    %374 = vmatprep.subr.mxu0 0.0
    %375 = vmatpush1.msra.mxu0 0.0
    %376 = vmatprep.subr.mxu0 0.0
    %377 = vmatpush1.msra.mxu0 0.0
    %378 = vmatprep.subr.mxu0 0.0
    %379 = vmatpush1.msra.mxu0 0.0
    %380 = vmatprep.subr.mxu0 0.0
    %381 = vmatpush1.msra.mxu0 0.0
    %382 = vmatprep.subr.mxu0 0.0
    %383 = vmatpush1.msra.mxu0 0.0
    %384 = vmatprep.subr.mxu0 0.0
    %385 = vmatpush1.msra.mxu0 0.0
    %386 = vmatprep.subr.mxu0 0.0
    %387 = vmatpush1.msra.mxu0 0.0
    %388 = vmatprep.subr.mxu0 0.0
    %389 = vmatpush1.msra.mxu0 0.0
    %390 = vmatprep.mubr.f32.mxu0 0.0
    %391 = vmatmul.mubr.f32.gmra.mrb[0].mxu0 %v321
    %v392 = vpop.f32.mrb[0].mxu0
    %v393 = vadd.f32 0.0, %v392
    %v394 = vpop.f32.mrb[0].mxu0
    %395 = vmatprep.mubr.f32.mxu0 0.0
    %396 = vmatmul.mubr.f32.gmra.mrb[0].mxu0 %v324
    %v397 = vpop.f32.mrb[0].mxu0
    %v398 = vadd.f32 0.0, %v397
    %v399 = vpop.f32.mrb[0].mxu0
    %400 = vdwg.mxu0
    %v401 = vmul.f32 %v223, %v136
    %v402 = vmul.f32 %v228, %v137
    %405 = vrot.lane.b32.xlu0 %v138, 16
    %v406 = vpop.permute.xlu0 %405
    %407 = vrot.lane.b32.xlu0 %v139, 16
    %v408 = vpop.permute.xlu0 %407
    %v411 = vmul.f32 %v223, %v406
    %v412 = vmul.f32 %v228, %v408
    %415 = vrot.lane.b32.xlu0 %v411, 112
    %v416 = vpop.permute.xlu0 %415
    %417 = vrot.lane.b32.xlu0 %v412, 112
    %v418 = vpop.permute.xlu0 %417
    %v421 = vsub.f32 %v401, %v416
    %v422 = vsub.f32 %v402, %v418
    %425 = vrot.lane.b32.xlu0 %v136, 16
    %v426 = vpop.permute.xlu0 %425
    %427 = vrot.lane.b32.xlu0 %v137, 16
    %v428 = vpop.permute.xlu0 %427
    %v431 = vmul.f32 %v223, %v426
    %v432 = vmul.f32 %v228, %v428
    %v433 = vmul.f32 %v223, %v138
    %v434 = vmul.f32 %v228, %v139
    %437 = vrot.lane.b32.xlu0 %v433, 16
    %v438 = vpop.permute.xlu0 %437
    %439 = vrot.lane.b32.xlu0 %v434, 16
    %v440 = vpop.permute.xlu0 %439
    %v443 = vadd.f32 %v431, %v438
    %v444 = vadd.f32 %v432, %v440
    %v445 = vmul.f32 %v308, %v136
    %v446 = vmul.f32 %v313, %v137
    %v447 = vmul.f32 %v308, %v406
    %v448 = vmul.f32 %v313, %v408
    %451 = vrot.lane.b32.xlu0 %v447, 112
    %v452 = vpop.permute.xlu0 %451
    %453 = vrot.lane.b32.xlu0 %v448, 112
    %v454 = vpop.permute.xlu0 %453
    %v457 = vsub.f32 %v445, %v452
    %v458 = vsub.f32 %v446, %v454
    %v459 = vmul.f32 %v308, %v426
    %v460 = vmul.f32 %v313, %v428
    %v461 = vmul.f32 %v308, %v138
    %v462 = vmul.f32 %v313, %v139
    %465 = vrot.lane.b32.xlu0 %v461, 16
    %v466 = vpop.permute.xlu0 %465
    %467 = vrot.lane.b32.xlu0 %v462, 16
    %v468 = vpop.permute.xlu0 %467
    %v471 = vadd.f32 %v459, %v466
    %v472 = vadd.f32 %v460, %v468
    %v473 = vlaneseq
    %v474 = vshrl.u32 %v473, 7
    %v475 = vsub.s32 0, %v474
    %v476 = vrot.slane %v140, %v475
    %vm477 = vcmask 64512
    %v479 = vsel %vm477, %v421, 0
    %v482 = vsel %vm477, %v457, 0
    %484 = vmatprep.subr.mxu0 0.0
    %485 = vmatpush1.xpose.msra.mxu0 %v482
    %486 = vmatprep.subr.mxu0 0.0
    %487 = vmatpush1.xpose.msra.mxu0 0.0
    %488 = vmatprep.subr.mxu0 0.0
    %489 = vmatpush1.xpose.msra.mxu0 0.0
    %490 = vmatprep.subr.mxu0 0.0
    %491 = vmatpush1.xpose.msra.mxu0 0.0
    %492 = vmatprep.subr.mxu0 0.0
    %493 = vmatpush1.xpose.msra.mxu0 0.0
    %494 = vmatprep.subr.mxu0 0.0
    %495 = vmatpush1.xpose.msra.mxu0 0.0
    %496 = vmatprep.subr.mxu0 0.0
    %497 = vmatpush1.xpose.msra.mxu0 0.0
    %498 = vmatprep.subr.mxu0 0.0
    %499 = vmatpush1.xpose.msra.mxu0 0.0
    %500 = vmatprep.subr.mxu0 0.0
    %501 = vmatpush1.xpose.msra.mxu0 0.0
    %502 = vmatprep.subr.mxu0 0.0
    %503 = vmatpush1.xpose.msra.mxu0 0.0
    %504 = vmatprep.subr.mxu0 0.0
    %505 = vmatpush1.xpose.msra.mxu0 0.0
    %506 = vmatprep.subr.mxu0 0.0
    %507 = vmatpush1.xpose.msra.mxu0 0.0
    %508 = vmatprep.subr.mxu0 0.0
    %509 = vmatpush1.xpose.msra.mxu0 0.0
    %510 = vmatprep.subr.mxu0 0.0
    %511 = vmatpush1.xpose.msra.mxu0 0.0
    %512 = vmatprep.subr.mxu0 0.0
    %513 = vmatpush1.xpose.msra.mxu0 0.0
    %514 = vmatprep.subr.mxu0 0.0
    %515 = vmatpush1.xpose.msra.mxu0 0.0
    %516 = vmatprep.subr.mxu0 0.0
    %517 = vmatpush1.xpose.msra.mxu0 0.0
    %518 = vmatprep.subr.mxu0 0.0
    %519 = vmatpush1.xpose.msra.mxu0 0.0
    %520 = vmatprep.subr.mxu0 0.0
    %521 = vmatpush1.xpose.msra.mxu0 0.0
    %522 = vmatprep.subr.mxu0 0.0
    %523 = vmatpush1.xpose.msra.mxu0 0.0
    %524 = vmatprep.subr.mxu0 0.0
    %525 = vmatpush1.xpose.msra.mxu0 0.0
    %526 = vmatprep.subr.mxu0 0.0
    %527 = vmatpush1.xpose.msra.mxu0 0.0
    %528 = vmatprep.subr.mxu0 0.0
    %529 = vmatpush1.xpose.msra.mxu0 0.0
    %530 = vmatprep.subr.mxu0 0.0
    %531 = vmatpush1.xpose.msra.mxu0 0.0
    %532 = vmatprep.subr.mxu0 0.0
    %533 = vmatpush1.xpose.msra.mxu0 0.0
    %534 = vmatprep.subr.mxu0 0.0
    %535 = vmatpush1.xpose.msra.mxu0 0.0
    %536 = vmatprep.subr.mxu0 0.0
    %537 = vmatpush1.xpose.msra.mxu0 0.0
    %538 = vmatprep.subr.mxu0 0.0
    %539 = vmatpush1.xpose.msra.mxu0 0.0
    %540 = vmatprep.subr.mxu0 0.0
    %541 = vmatpush1.xpose.msra.mxu0 0.0
    %542 = vmatprep.subr.mxu0 0.0
    %543 = vmatpush1.xpose.msra.mxu0 0.0
    %544 = vmatprep.subr.mxu0 0.0
    %545 = vmatpush1.xpose.msra.mxu0 0.0
    %546 = vmatprep.subr.mxu0 0.0
    %547 = vmatpush1.xpose.msra.mxu0 0.0
    %548 = vmatprep.mubr.f32.mxu0 0.0
    %549 = vmatmul.mubr.f32.gmra.mrb[0].mxu0 %v479
    %v550 = vpop.f32.mrb[0].mxu0
    %v551 = vadd.f32 %v476, %v550
    %v552 = vpop.f32.mrb[0].mxu0
    %553 = vdwg.mxu0
    %v554 = vsel %vm477, %v551, -inf
    %555 = vmax.xlane.f32.xlu0 %v554
    %v556 = vpop.xlane.xlu0 %555
    %v557 = vsub.f32 %v551, %v556
    %v558 = vmul.f32 %v557, 1.442695
    %v559 = vpow.pop %v558
    %v560 = vsel %vm477, %v559, 0.0
    %561 = vadd.xlane.f32.xlu0 %v560
    %v562 = vpop.xlane.xlu0 %561
    %v563 = vrcp.pop %v562
    %v564 = vmul.f32 %v559, %v563
    %v566 = vsel %vm477, %v564, 0
    %568 = vmatprep.subr.mxu0 0.0
    %569 = vmatpush1.msra.mxu0 %v393
    %570 = vmatprep.subr.mxu0 0.0
    %571 = vmatpush1.msra.mxu0 0.0
    %572 = vmatprep.subr.mxu0 0.0
    %573 = vmatpush1.msra.mxu0 0.0
    %574 = vmatprep.subr.mxu0 0.0
    %575 = vmatpush1.msra.mxu0 0.0
    %576 = vmatprep.subr.mxu0 0.0
    %577 = vmatpush1.msra.mxu0 0.0
    %578 = vmatprep.subr.mxu0 0.0
    %579 = vmatpush1.msra.mxu0 0.0
    %580 = vmatprep.subr.mxu0 0.0
    %581 = vmatpush1.msra.mxu0 0.0
    %582 = vmatprep.subr.mxu0 0.0
    %583 = vmatpush1.msra.mxu0 0.0
    %584 = vmatprep.subr.mxu0 0.0
    %585 = vmatpush1.msra.mxu0 0.0
    %586 = vmatprep.subr.mxu0 0.0
    %587 = vmatpush1.msra.mxu0 0.0
    %588 = vmatprep.subr.mxu0 0.0
    %589 = vmatpush1.msra.mxu0 0.0
    %590 = vmatprep.subr.mxu0 0.0
    %591 = vmatpush1.msra.mxu0 0.0
    %592 = vmatprep.subr.mxu0 0.0
    %593 = vmatpush1.msra.mxu0 0.0
    %594 = vmatprep.subr.mxu0 0.0
    %595 = vmatpush1.msra.mxu0 0.0
    %596 = vmatprep.subr.mxu0 0.0
    %597 = vmatpush1.msra.mxu0 0.0
    %598 = vmatprep.subr.mxu0 0.0
    %599 = vmatpush1.msra.mxu0 0.0
    %600 = vmatprep.subr.mxu0 0.0
    %601 = vmatpush1.msra.mxu0 0.0
    %602 = vmatprep.subr.mxu0 0.0
    %603 = vmatpush1.msra.mxu0 0.0
    %604 = vmatprep.subr.mxu0 0.0
    %605 = vmatpush1.msra.mxu0 0.0
    %606 = vmatprep.subr.mxu0 0.0
    %607 = vmatpush1.msra.mxu0 0.0
    %608 = vmatprep.subr.mxu0 0.0
    %609 = vmatpush1.msra.mxu0 0.0
    %610 = vmatprep.subr.mxu0 0.0
    %611 = vmatpush1.msra.mxu0 0.0
    %612 = vmatprep.subr.mxu0 0.0
    %613 = vmatpush1.msra.mxu0 0.0
    %614 = vmatprep.subr.mxu0 0.0
    %615 = vmatpush1.msra.mxu0 0.0
    %616 = vmatprep.subr.mxu0 0.0
    %617 = vmatpush1.msra.mxu0 0.0
    %618 = vmatprep.subr.mxu0 0.0
    %619 = vmatpush1.msra.mxu0 0.0
    %620 = vmatprep.subr.mxu0 0.0
    %621 = vmatpush1.msra.mxu0 0.0
    %622 = vmatprep.subr.mxu0 0.0
    %623 = vmatpush1.msra.mxu0 0.0
    %624 = vmatprep.subr.mxu0 0.0
    %625 = vmatpush1.msra.mxu0 0.0
    %626 = vmatprep.subr.mxu0 0.0
    %627 = vmatpush1.msra.mxu0 0.0
    %628 = vmatprep.subr.mxu0 0.0
    %629 = vmatpush1.msra.mxu0 0.0
    %630 = vmatprep.subr.mxu0 0.0
    %631 = vmatpush1.msra.mxu0 0.0
    %632 = vmatprep.mubr.f32.mxu0 0.0
    %633 = vmatmul.mubr.f32.gmra.mrb[0].mxu0 %v566
    %v634 = vpop.f32.mrb[0].mxu0
    %v635 = vadd.f32 0.0, %v634
    %v636 = vpop.f32.mrb[0].mxu0
    %637 = vdwg.mxu0
    %638 = vrot.lane.b32.xlu0 %v421, 120
    %v639 = vpop.permute.xlu0 %638
    %640 = vrot.lane.b32.xlu0 %v457, 120
    %v641 = vpop.permute.xlu0 %640
    %v642 = vsel %vm477, %v639, 0
    %v644 = vsel %vm477, %v641, 0
    %646 = vmatprep.subr.mxu0 0.0
    %647 = vmatpush1.xpose.msra.mxu0 %v644
    %648 = vmatprep.subr.mxu0 0.0
    %649 = vmatpush1.xpose.msra.mxu0 0.0
    %650 = vmatprep.subr.mxu0 0.0
    %651 = vmatpush1.xpose.msra.mxu0 0.0
    %652 = vmatprep.subr.mxu0 0.0
    %653 = vmatpush1.xpose.msra.mxu0 0.0
    %654 = vmatprep.subr.mxu0 0.0
    %655 = vmatpush1.xpose.msra.mxu0 0.0
    %656 = vmatprep.subr.mxu0 0.0
    %657 = vmatpush1.xpose.msra.mxu0 0.0
    %658 = vmatprep.subr.mxu0 0.0
    %659 = vmatpush1.xpose.msra.mxu0 0.0
    %660 = vmatprep.subr.mxu0 0.0
    %661 = vmatpush1.xpose.msra.mxu0 0.0
    %662 = vmatprep.subr.mxu0 0.0
    %663 = vmatpush1.xpose.msra.mxu0 0.0
    %664 = vmatprep.subr.mxu0 0.0
    %665 = vmatpush1.xpose.msra.mxu0 0.0
    %666 = vmatprep.subr.mxu0 0.0
    %667 = vmatpush1.xpose.msra.mxu0 0.0
    %668 = vmatprep.subr.mxu0 0.0
    %669 = vmatpush1.xpose.msra.mxu0 0.0
    %670 = vmatprep.subr.mxu0 0.0
    %671 = vmatpush1.xpose.msra.mxu0 0.0
    %672 = vmatprep.subr.mxu0 0.0
    %673 = vmatpush1.xpose.msra.mxu0 0.0
    %674 = vmatprep.subr.mxu0 0.0
    %675 = vmatpush1.xpose.msra.mxu0 0.0
    %676 = vmatprep.subr.mxu0 0.0
    %677 = vmatpush1.xpose.msra.mxu0 0.0
    %678 = vmatprep.subr.mxu0 0.0
    %679 = vmatpush1.xpose.msra.mxu0 0.0
    %680 = vmatprep.subr.mxu0 0.0
    %681 = vmatpush1.xpose.msra.mxu0 0.0
    %682 = vmatprep.subr.mxu0 0.0
    %683 = vmatpush1.xpose.msra.mxu0 0.0
    %684 = vmatprep.subr.mxu0 0.0
    %685 = vmatpush1.xpose.msra.mxu0 0.0
    %686 = vmatprep.subr.mxu0 0.0
    %687 = vmatpush1.xpose.msra.mxu0 0.0
    %688 = vmatprep.subr.mxu0 0.0
    %689 = vmatpush1.xpose.msra.mxu0 0.0
    %690 = vmatprep.subr.mxu0 0.0
    %691 = vmatpush1.xpose.msra.mxu0 0.0
    %692 = vmatprep.subr.mxu0 0.0
    %693 = vmatpush1.xpose.msra.mxu0 0.0
    %694 = vmatprep.subr.mxu0 0.0
    %695 = vmatpush1.xpose.msra.mxu0 0.0
    %696 = vmatprep.subr.mxu0 0.0
    %697 = vmatpush1.xpose.msra.mxu0 0.0
    %698 = vmatprep.subr.mxu0 0.0
    %699 = vmatpush1.xpose.msra.mxu0 0.0
    %700 = vmatprep.subr.mxu0 0.0
    %701 = vmatpush1.xpose.msra.mxu0 0.0
    %702 = vmatprep.subr.mxu0 0.0
    %703 = vmatpush1.xpose.msra.mxu0 0.0
    %704 = vmatprep.subr.mxu0 0.0
    %705 = vmatpush1.xpose.msra.mxu0 0.0
    %706 = vmatprep.subr.mxu0 0.0
    %707 = vmatpush1.xpose.msra.mxu0 0.0
    %708 = vmatprep.subr.mxu0 0.0
    %709 = vmatpush1.xpose.msra.mxu0 0.0
    %710 = vmatprep.mubr.f32.mxu0 0.0
    %711 = vmatmul.mubr.f32.gmra.mrb[0].mxu0 %v642
    %v712 = vpop.f32.mrb[0].mxu0
    %v713 = vadd.f32 %v476, %v712
    %v714 = vpop.f32.mrb[0].mxu0
    %715 = vdwg.mxu0
    %v716 = vsel %vm477, %v713, -inf
    %717 = vmax.xlane.f32.xlu0 %v716
    %v718 = vpop.xlane.xlu0 %717
    %v719 = vsub.f32 %v713, %v718
    %v720 = vmul.f32 %v719, 1.442695
    %v721 = vpow.pop %v720
    %v722 = vsel %vm477, %v721, 0.0
    %723 = vadd.xlane.f32.xlu0 %v722
    %v724 = vpop.xlane.xlu0 %723
    %v725 = vrcp.pop %v724
    %v726 = vmul.f32 %v721, %v725
    %728 = vrot.lane.b32.xlu0 %v393, 120
    %v729 = vpop.permute.xlu0 %728
    %v732 = vsel %vm477, %v726, 0
    %734 = vmatprep.subr.mxu0 0.0
    %735 = vmatpush1.msra.mxu0 %v729
    %736 = vmatprep.subr.mxu0 0.0
    %737 = vmatpush1.msra.mxu0 0.0
    %738 = vmatprep.subr.mxu0 0.0
    %739 = vmatpush1.msra.mxu0 0.0
    %740 = vmatprep.subr.mxu0 0.0
    %741 = vmatpush1.msra.mxu0 0.0
    %742 = vmatprep.subr.mxu0 0.0
    %743 = vmatpush1.msra.mxu0 0.0
    %744 = vmatprep.subr.mxu0 0.0
    %745 = vmatpush1.msra.mxu0 0.0
    %746 = vmatprep.subr.mxu0 0.0
    %747 = vmatpush1.msra.mxu0 0.0
    %748 = vmatprep.subr.mxu0 0.0
    %749 = vmatpush1.msra.mxu0 0.0
    %750 = vmatprep.subr.mxu0 0.0
    %751 = vmatpush1.msra.mxu0 0.0
    %752 = vmatprep.subr.mxu0 0.0
    %753 = vmatpush1.msra.mxu0 0.0
    %754 = vmatprep.subr.mxu0 0.0
    %755 = vmatpush1.msra.mxu0 0.0
    %756 = vmatprep.subr.mxu0 0.0
    %757 = vmatpush1.msra.mxu0 0.0
    %758 = vmatprep.subr.mxu0 0.0
    %759 = vmatpush1.msra.mxu0 0.0
    %760 = vmatprep.subr.mxu0 0.0
    %761 = vmatpush1.msra.mxu0 0.0
    %762 = vmatprep.subr.mxu0 0.0
    %763 = vmatpush1.msra.mxu0 0.0
    %764 = vmatprep.subr.mxu0 0.0
    %765 = vmatpush1.msra.mxu0 0.0
    %766 = vmatprep.subr.mxu0 0.0
    %767 = vmatpush1.msra.mxu0 0.0
    %768 = vmatprep.subr.mxu0 0.0
    %769 = vmatpush1.msra.mxu0 0.0
    %770 = vmatprep.subr.mxu0 0.0
    %771 = vmatpush1.msra.mxu0 0.0
    %772 = vmatprep.subr.mxu0 0.0
    %773 = vmatpush1.msra.mxu0 0.0
    %774 = vmatprep.subr.mxu0 0.0
    %775 = vmatpush1.msra.mxu0 0.0
    %776 = vmatprep.subr.mxu0 0.0
    %777 = vmatpush1.msra.mxu0 0.0
    %778 = vmatprep.subr.mxu0 0.0
    %779 = vmatpush1.msra.mxu0 0.0
    %780 = vmatprep.subr.mxu0 0.0
    %781 = vmatpush1.msra.mxu0 0.0
    %782 = vmatprep.subr.mxu0 0.0
    %783 = vmatpush1.msra.mxu0 0.0
    %784 = vmatprep.subr.mxu0 0.0
    %785 = vmatpush1.msra.mxu0 0.0
    %786 = vmatprep.subr.mxu0 0.0
    %787 = vmatpush1.msra.mxu0 0.0
    %788 = vmatprep.subr.mxu0 0.0
    %789 = vmatpush1.msra.mxu0 0.0
    %790 = vmatprep.subr.mxu0 0.0
    %791 = vmatpush1.msra.mxu0 0.0
    %792 = vmatprep.subr.mxu0 0.0
    %793 = vmatpush1.msra.mxu0 0.0
    %794 = vmatprep.subr.mxu0 0.0
    %795 = vmatpush1.msra.mxu0 0.0
    %796 = vmatprep.subr.mxu0 0.0
    %797 = vmatpush1.msra.mxu0 0.0
    %798 = vmatprep.mubr.f32.mxu0 0.0
    %799 = vmatmul.mubr.f32.gmra.mrb[0].mxu0 %v732
    %v800 = vpop.f32.mrb[0].mxu0
    %v801 = vadd.f32 0.0, %v800
    %v802 = vpop.f32.mrb[0].mxu0
    %803 = vdwg.mxu0
    %v805 = vsel %vm477, %v801, 0
    %807 = vmatprep.subr.mxu0 0.0
    %808 = vmatpush1.msra.mxu0 %v142
    %809 = vmatprep.subr.mxu0 0.0
    %810 = vmatpush1.msra.mxu0 0.0
    %811 = vmatprep.subr.mxu0 0.0
    %812 = vmatpush1.msra.mxu0 0.0
    %813 = vmatprep.subr.mxu0 0.0
    %814 = vmatpush1.msra.mxu0 0.0
    %815 = vmatprep.subr.mxu0 0.0
    %816 = vmatpush1.msra.mxu0 0.0
    %817 = vmatprep.subr.mxu0 0.0
    %818 = vmatpush1.msra.mxu0 0.0
    %819 = vmatprep.subr.mxu0 0.0
    %820 = vmatpush1.msra.mxu0 0.0
    %821 = vmatprep.subr.mxu0 0.0
    %822 = vmatpush1.msra.mxu0 0.0
    %823 = vmatprep.subr.mxu0 0.0
    %824 = vmatpush1.msra.mxu0 0.0
    %825 = vmatprep.subr.mxu0 0.0
    %826 = vmatpush1.msra.mxu0 0.0
    %827 = vmatprep.subr.mxu0 0.0
    %828 = vmatpush1.msra.mxu0 0.0
    %829 = vmatprep.subr.mxu0 0.0
    %830 = vmatpush1.msra.mxu0 0.0
    %831 = vmatprep.subr.mxu0 0.0
    %832 = vmatpush1.msra.mxu0 0.0
    %833 = vmatprep.subr.mxu0 0.0
    %834 = vmatpush1.msra.mxu0 0.0
    %835 = vmatprep.subr.mxu0 0.0
    %836 = vmatpush1.msra.mxu0 0.0
    %837 = vmatprep.subr.mxu0 0.0
    %838 = vmatpush1.msra.mxu0 0.0
    %839 = vmatprep.subr.mxu0 0.0
    %840 = vmatpush1.msra.mxu0 0.0
    %841 = vmatprep.subr.mxu0 0.0
    %842 = vmatpush1.msra.mxu0 0.0
    %843 = vmatprep.subr.mxu0 0.0
    %844 = vmatpush1.msra.mxu0 0.0
    %845 = vmatprep.subr.mxu0 0.0
    %846 = vmatpush1.msra.mxu0 0.0
    %847 = vmatprep.subr.mxu0 0.0
    %848 = vmatpush1.msra.mxu0 0.0
    %849 = vmatprep.subr.mxu0 0.0
    %850 = vmatpush1.msra.mxu0 0.0
    %851 = vmatprep.subr.mxu0 0.0
    %852 = vmatpush1.msra.mxu0 0.0
    %853 = vmatprep.subr.mxu0 0.0
    %854 = vmatpush1.msra.mxu0 0.0
    %855 = vmatprep.subr.mxu0 0.0
    %856 = vmatpush1.msra.mxu0 0.0
    %857 = vmatprep.subr.mxu0 0.0
    %858 = vmatpush1.msra.mxu0 0.0
    %859 = vmatprep.subr.mxu0 0.0
    %860 = vmatpush1.msra.mxu0 0.0
    %861 = vmatprep.subr.mxu0 0.0
    %862 = vmatpush1.msra.mxu0 0.0
    %863 = vmatprep.subr.mxu0 0.0
    %864 = vmatpush1.msra.mxu0 0.0
    %865 = vmatprep.subr.mxu0 0.0
    %866 = vmatpush1.msra.mxu0 0.0
    %867 = vmatprep.subr.mxu0 0.0
    %868 = vmatpush1.msra.mxu0 0.0
    %869 = vmatprep.subr.mxu0 0.0
    %870 = vmatpush1.msra.mxu0 0.0
    %871 = vmatprep.mubr.f32.mxu0 0.0
    %872 = vmatmul.mubr.f32.gmra.mrb[0].mxu0 %v805
    %v873 = vpop.f32.mrb[0].mxu0
    %v874 = vadd.f32 0.0, %v873
    %v875 = vpop.f32.mrb[0].mxu0
    %876 = vdwg.mxu0
    %v878 = vsel %vm477, %v635, 0
    %880 = vmatprep.subr.mxu0 0.0
    %881 = vmatpush1.msra.mxu0 %v141
    %882 = vmatprep.subr.mxu0 0.0
    %883 = vmatpush1.msra.mxu0 0.0
    %884 = vmatprep.subr.mxu0 0.0
    %885 = vmatpush1.msra.mxu0 0.0
    %886 = vmatprep.subr.mxu0 0.0
    %887 = vmatpush1.msra.mxu0 0.0
    %888 = vmatprep.subr.mxu0 0.0
    %889 = vmatpush1.msra.mxu0 0.0
    %890 = vmatprep.subr.mxu0 0.0
    %891 = vmatpush1.msra.mxu0 0.0
    %892 = vmatprep.subr.mxu0 0.0
    %893 = vmatpush1.msra.mxu0 0.0
    %894 = vmatprep.subr.mxu0 0.0
    %895 = vmatpush1.msra.mxu0 0.0
    %896 = vmatprep.subr.mxu0 0.0
    %897 = vmatpush1.msra.mxu0 0.0
    %898 = vmatprep.subr.mxu0 0.0
    %899 = vmatpush1.msra.mxu0 0.0
    %900 = vmatprep.subr.mxu0 0.0
    %901 = vmatpush1.msra.mxu0 0.0
    %902 = vmatprep.subr.mxu0 0.0
    %903 = vmatpush1.msra.mxu0 0.0
    %904 = vmatprep.subr.mxu0 0.0
    %905 = vmatpush1.msra.mxu0 0.0
    %906 = vmatprep.subr.mxu0 0.0
    %907 = vmatpush1.msra.mxu0 0.0
    %908 = vmatprep.subr.mxu0 0.0
    %909 = vmatpush1.msra.mxu0 0.0
    %910 = vmatprep.subr.mxu0 0.0
    %911 = vmatpush1.msra.mxu0 0.0
    %912 = vmatprep.subr.mxu0 0.0
    %913 = vmatpush1.msra.mxu0 0.0
    %914 = vmatprep.subr.mxu0 0.0
    %915 = vmatpush1.msra.mxu0 0.0
    %916 = vmatprep.subr.mxu0 0.0
    %917 = vmatpush1.msra.mxu0 0.0
    %918 = vmatprep.subr.mxu0 0.0
    %919 = vmatpush1.msra.mxu0 0.0
    %920 = vmatprep.subr.mxu0 0.0
    %921 = vmatpush1.msra.mxu0 0.0
    %922 = vmatprep.subr.mxu0 0.0
    %923 = vmatpush1.msra.mxu0 0.0
    %924 = vmatprep.subr.mxu0 0.0
    %925 = vmatpush1.msra.mxu0 0.0
    %926 = vmatprep.subr.mxu0 0.0
    %927 = vmatpush1.msra.mxu0 0.0
    %928 = vmatprep.subr.mxu0 0.0
    %929 = vmatpush1.msra.mxu0 0.0
    %930 = vmatprep.subr.mxu0 0.0
    %931 = vmatpush1.msra.mxu0 0.0
    %932 = vmatprep.subr.mxu0 0.0
    %933 = vmatpush1.msra.mxu0 0.0
    %934 = vmatprep.subr.mxu0 0.0
    %935 = vmatpush1.msra.mxu0 0.0
    %936 = vmatprep.subr.mxu0 0.0
    %937 = vmatpush1.msra.mxu0 0.0
    %938 = vmatprep.subr.mxu0 0.0
    %939 = vmatpush1.msra.mxu0 0.0
    %940 = vmatprep.subr.mxu0 0.0
    %941 = vmatpush1.msra.mxu0 0.0
    %942 = vmatprep.subr.mxu0 0.0
    %943 = vmatpush1.msra.mxu0 0.0
    %944 = vmatprep.mubr.f32.mxu0 0.0
    %945 = vmatmul.mubr.f32.gmra.mrb[0].mxu0 %v878
    %v946 = vpop.f32.mrb[0].mxu0
    %v947 = vadd.f32 %v874, %v946
    %v948 = vpop.f32.mrb[0].mxu0
    %949 = vdwg.mxu0
    %951 = vrot.lane.b32.xlu0 %v443, 112
    %v952 = vpop.permute.xlu0 %951
    %954 = vrot.lane.b32.xlu0 %v471, 112
    %v955 = vpop.permute.xlu0 %954
    %v956 = vsel %vm477, %v952, 0
    %v958 = vsel %vm477, %v955, 0
    %960 = vmatprep.subr.mxu0 0.0
    %961 = vmatpush1.xpose.msra.mxu0 %v958
    %962 = vmatprep.subr.mxu0 0.0
    %963 = vmatpush1.xpose.msra.mxu0 0.0
    %964 = vmatprep.subr.mxu0 0.0
    %965 = vmatpush1.xpose.msra.mxu0 0.0
    %966 = vmatprep.subr.mxu0 0.0
    %967 = vmatpush1.xpose.msra.mxu0 0.0
    %968 = vmatprep.subr.mxu0 0.0
    %969 = vmatpush1.xpose.msra.mxu0 0.0
    %970 = vmatprep.subr.mxu0 0.0
    %971 = vmatpush1.xpose.msra.mxu0 0.0
    %972 = vmatprep.subr.mxu0 0.0
    %973 = vmatpush1.xpose.msra.mxu0 0.0
    %974 = vmatprep.subr.mxu0 0.0
    %975 = vmatpush1.xpose.msra.mxu0 0.0
    %976 = vmatprep.subr.mxu0 0.0
    %977 = vmatpush1.xpose.msra.mxu0 0.0
    %978 = vmatprep.subr.mxu0 0.0
    %979 = vmatpush1.xpose.msra.mxu0 0.0
    %980 = vmatprep.subr.mxu0 0.0
    %981 = vmatpush1.xpose.msra.mxu0 0.0
    %982 = vmatprep.subr.mxu0 0.0
    %983 = vmatpush1.xpose.msra.mxu0 0.0
    %984 = vmatprep.subr.mxu0 0.0
    %985 = vmatpush1.xpose.msra.mxu0 0.0
    %986 = vmatprep.subr.mxu0 0.0
    %987 = vmatpush1.xpose.msra.mxu0 0.0
    %988 = vmatprep.subr.mxu0 0.0
    %989 = vmatpush1.xpose.msra.mxu0 0.0
    %990 = vmatprep.subr.mxu0 0.0
    %991 = vmatpush1.xpose.msra.mxu0 0.0
    %992 = vmatprep.subr.mxu0 0.0
    %993 = vmatpush1.xpose.msra.mxu0 0.0
    %994 = vmatprep.subr.mxu0 0.0
    %995 = vmatpush1.xpose.msra.mxu0 0.0
    %996 = vmatprep.subr.mxu0 0.0
    %997 = vmatpush1.xpose.msra.mxu0 0.0
    %998 = vmatprep.subr.mxu0 0.0
    %999 = vmatpush1.xpose.msra.mxu0 0.0
    %1000 = vmatprep.subr.mxu0 0.0
    %1001 = vmatpush1.xpose.msra.mxu0 0.0
    %1002 = vmatprep.subr.mxu0 0.0
    %1003 = vmatpush1.xpose.msra.mxu0 0.0
    %1004 = vmatprep.subr.mxu0 0.0
    %1005 = vmatpush1.xpose.msra.mxu0 0.0
    %1006 = vmatprep.subr.mxu0 0.0
    %1007 = vmatpush1.xpose.msra.mxu0 0.0
    %1008 = vmatprep.subr.mxu0 0.0
    %1009 = vmatpush1.xpose.msra.mxu0 0.0
    %1010 = vmatprep.subr.mxu0 0.0
    %1011 = vmatpush1.xpose.msra.mxu0 0.0
    %1012 = vmatprep.subr.mxu0 0.0
    %1013 = vmatpush1.xpose.msra.mxu0 0.0
    %1014 = vmatprep.subr.mxu0 0.0
    %1015 = vmatpush1.xpose.msra.mxu0 0.0
    %1016 = vmatprep.subr.mxu0 0.0
    %1017 = vmatpush1.xpose.msra.mxu0 0.0
    %1018 = vmatprep.subr.mxu0 0.0
    %1019 = vmatpush1.xpose.msra.mxu0 0.0
    %1020 = vmatprep.subr.mxu0 0.0
    %1021 = vmatpush1.xpose.msra.mxu0 0.0
    %1022 = vmatprep.subr.mxu0 0.0
    %1023 = vmatpush1.xpose.msra.mxu0 0.0
    %1024 = vmatprep.mubr.f32.mxu0 0.0
    %1025 = vmatmul.mubr.f32.gmra.mrb[0].mxu0 %v956
    %v1026 = vpop.f32.mrb[0].mxu0
    %v1027 = vadd.f32 %v476, %v1026
    %v1028 = vpop.f32.mrb[0].mxu0
    %1029 = vdwg.mxu0
    %v1030 = vsel %vm477, %v1027, -inf
    %1031 = vmax.xlane.f32.xlu0 %v1030
    %v1032 = vpop.xlane.xlu0 %1031
    %v1033 = vsub.f32 %v1027, %v1032
    %v1034 = vmul.f32 %v1033, 1.442695
    %v1035 = vpow.pop %v1034
    %v1036 = vsel %vm477, %v1035, 0.0
    %1037 = vadd.xlane.f32.xlu0 %v1036
    %v1038 = vpop.xlane.xlu0 %1037
    %v1039 = vrcp.pop %v1038
    %v1040 = vmul.f32 %v1035, %v1039
    %1041 = vrot.lane.b32.xlu0 %v393, 112
    %v1042 = vpop.permute.xlu0 %1041
    %v1045 = vsel %vm477, %v1040, 0
    %1047 = vmatprep.subr.mxu0 0.0
    %1048 = vmatpush1.msra.mxu0 %v1042
    %1049 = vmatprep.subr.mxu0 0.0
    %1050 = vmatpush1.msra.mxu0 0.0
    %1051 = vmatprep.subr.mxu0 0.0
    %1052 = vmatpush1.msra.mxu0 0.0
    %1053 = vmatprep.subr.mxu0 0.0
    %1054 = vmatpush1.msra.mxu0 0.0
    %1055 = vmatprep.subr.mxu0 0.0
    %1056 = vmatpush1.msra.mxu0 0.0
    %1057 = vmatprep.subr.mxu0 0.0
    %1058 = vmatpush1.msra.mxu0 0.0
    %1059 = vmatprep.subr.mxu0 0.0
    %1060 = vmatpush1.msra.mxu0 0.0
    %1061 = vmatprep.subr.mxu0 0.0
    %1062 = vmatpush1.msra.mxu0 0.0
    %1063 = vmatprep.subr.mxu0 0.0
    %1064 = vmatpush1.msra.mxu0 0.0
    %1065 = vmatprep.subr.mxu0 0.0
    %1066 = vmatpush1.msra.mxu0 0.0
    %1067 = vmatprep.subr.mxu0 0.0
    %1068 = vmatpush1.msra.mxu0 0.0
    %1069 = vmatprep.subr.mxu0 0.0
    %1070 = vmatpush1.msra.mxu0 0.0
    %1071 = vmatprep.subr.mxu0 0.0
    %1072 = vmatpush1.msra.mxu0 0.0
    %1073 = vmatprep.subr.mxu0 0.0
    %1074 = vmatpush1.msra.mxu0 0.0
    %1075 = vmatprep.subr.mxu0 0.0
    %1076 = vmatpush1.msra.mxu0 0.0
    %1077 = vmatprep.subr.mxu0 0.0
    %1078 = vmatpush1.msra.mxu0 0.0
    %1079 = vmatprep.subr.mxu0 0.0
    %1080 = vmatpush1.msra.mxu0 0.0
    %1081 = vmatprep.subr.mxu0 0.0
    %1082 = vmatpush1.msra.mxu0 0.0
    %1083 = vmatprep.subr.mxu0 0.0
    %1084 = vmatpush1.msra.mxu0 0.0
    %1085 = vmatprep.subr.mxu0 0.0
    %1086 = vmatpush1.msra.mxu0 0.0
    %1087 = vmatprep.subr.mxu0 0.0
    %1088 = vmatpush1.msra.mxu0 0.0
    %1089 = vmatprep.subr.mxu0 0.0
    %1090 = vmatpush1.msra.mxu0 0.0
    %1091 = vmatprep.subr.mxu0 0.0
    %1092 = vmatpush1.msra.mxu0 0.0
    %1093 = vmatprep.subr.mxu0 0.0
    %1094 = vmatpush1.msra.mxu0 0.0
    %1095 = vmatprep.subr.mxu0 0.0
    %1096 = vmatpush1.msra.mxu0 0.0
    %1097 = vmatprep.subr.mxu0 0.0
    %1098 = vmatpush1.msra.mxu0 0.0
    %1099 = vmatprep.subr.mxu0 0.0
    %1100 = vmatpush1.msra.mxu0 0.0
    %1101 = vmatprep.subr.mxu0 0.0
    %1102 = vmatpush1.msra.mxu0 0.0
    %1103 = vmatprep.subr.mxu0 0.0
    %1104 = vmatpush1.msra.mxu0 0.0
    %1105 = vmatprep.subr.mxu0 0.0
    %1106 = vmatpush1.msra.mxu0 0.0
    %1107 = vmatprep.subr.mxu0 0.0
    %1108 = vmatpush1.msra.mxu0 0.0
    %1109 = vmatprep.subr.mxu0 0.0
    %1110 = vmatpush1.msra.mxu0 0.0
    %1111 = vmatprep.mubr.f32.mxu0 0.0
    %1112 = vmatmul.mubr.f32.gmra.mrb[0].mxu0 %v1045
    %v1113 = vpop.f32.mrb[0].mxu0
    %v1114 = vadd.f32 0.0, %v1113
    %v1115 = vpop.f32.mrb[0].mxu0
    %1116 = vdwg.mxu0
    %v1118 = vsel %vm477, %v1114, 0
    %1120 = vmatprep.subr.mxu0 0.0
    %1121 = vmatpush1.msra.mxu0 %v143
    %1122 = vmatprep.subr.mxu0 0.0
    %1123 = vmatpush1.msra.mxu0 0.0
    %1124 = vmatprep.subr.mxu0 0.0
    %1125 = vmatpush1.msra.mxu0 0.0
    %1126 = vmatprep.subr.mxu0 0.0
    %1127 = vmatpush1.msra.mxu0 0.0
    %1128 = vmatprep.subr.mxu0 0.0
    %1129 = vmatpush1.msra.mxu0 0.0
    %1130 = vmatprep.subr.mxu0 0.0
    %1131 = vmatpush1.msra.mxu0 0.0
    %1132 = vmatprep.subr.mxu0 0.0
    %1133 = vmatpush1.msra.mxu0 0.0
    %1134 = vmatprep.subr.mxu0 0.0
    %1135 = vmatpush1.msra.mxu0 0.0
    %1136 = vmatprep.subr.mxu0 0.0
    %1137 = vmatpush1.msra.mxu0 0.0
    %1138 = vmatprep.subr.mxu0 0.0
    %1139 = vmatpush1.msra.mxu0 0.0
    %1140 = vmatprep.subr.mxu0 0.0
    %1141 = vmatpush1.msra.mxu0 0.0
    %1142 = vmatprep.subr.mxu0 0.0
    %1143 = vmatpush1.msra.mxu0 0.0
    %1144 = vmatprep.subr.mxu0 0.0
    %1145 = vmatpush1.msra.mxu0 0.0
    %1146 = vmatprep.subr.mxu0 0.0
    %1147 = vmatpush1.msra.mxu0 0.0
    %1148 = vmatprep.subr.mxu0 0.0
    %1149 = vmatpush1.msra.mxu0 0.0
    %1150 = vmatprep.subr.mxu0 0.0
    %1151 = vmatpush1.msra.mxu0 0.0
    %1152 = vmatprep.subr.mxu0 0.0
    %1153 = vmatpush1.msra.mxu0 0.0
    %1154 = vmatprep.subr.mxu0 0.0
    %1155 = vmatpush1.msra.mxu0 0.0
    %1156 = vmatprep.subr.mxu0 0.0
    %1157 = vmatpush1.msra.mxu0 0.0
    %1158 = vmatprep.subr.mxu0 0.0
    %1159 = vmatpush1.msra.mxu0 0.0
    %1160 = vmatprep.subr.mxu0 0.0
    %1161 = vmatpush1.msra.mxu0 0.0
    %1162 = vmatprep.subr.mxu0 0.0
    %1163 = vmatpush1.msra.mxu0 0.0
    %1164 = vmatprep.subr.mxu0 0.0
    %1165 = vmatpush1.msra.mxu0 0.0
    %1166 = vmatprep.subr.mxu0 0.0
    %1167 = vmatpush1.msra.mxu0 0.0
    %1168 = vmatprep.subr.mxu0 0.0
    %1169 = vmatpush1.msra.mxu0 0.0
    %1170 = vmatprep.subr.mxu0 0.0
    %1171 = vmatpush1.msra.mxu0 0.0
    %1172 = vmatprep.subr.mxu0 0.0
    %1173 = vmatpush1.msra.mxu0 0.0
    %1174 = vmatprep.subr.mxu0 0.0
    %1175 = vmatpush1.msra.mxu0 0.0
    %1176 = vmatprep.subr.mxu0 0.0
    %1177 = vmatpush1.msra.mxu0 0.0
    %1178 = vmatprep.subr.mxu0 0.0
    %1179 = vmatpush1.msra.mxu0 0.0
    %1180 = vmatprep.subr.mxu0 0.0
    %1181 = vmatpush1.msra.mxu0 0.0
    %1182 = vmatprep.subr.mxu0 0.0
    %1183 = vmatpush1.msra.mxu0 0.0
    %1184 = vmatprep.mubr.f32.mxu0 0.0
    %1185 = vmatmul.mubr.f32.gmra.mrb[0].mxu0 %v1118
    %v1186 = vpop.f32.mrb[0].mxu0
    %v1187 = vadd.f32 0.0, %v1186
    %v1188 = vpop.f32.mrb[0].mxu0
    %1189 = vdwg.mxu0
    %v1190 = vadd.f32 %v947, %v1187
    %1191 = vrot.lane.b32.xlu0 %v443, 104
    %v1192 = vpop.permute.xlu0 %1191
    %1193 = vrot.lane.b32.xlu0 %v471, 104
    %v1194 = vpop.permute.xlu0 %1193
    %v1195 = vsel %vm477, %v1192, 0
    %v1197 = vsel %vm477, %v1194, 0
    %1199 = vmatprep.subr.mxu0 0.0
    %1200 = vmatpush1.xpose.msra.mxu0 %v1197
    %1201 = vmatprep.subr.mxu0 0.0
    %1202 = vmatpush1.xpose.msra.mxu0 0.0
    %1203 = vmatprep.subr.mxu0 0.0
    %1204 = vmatpush1.xpose.msra.mxu0 0.0
    %1205 = vmatprep.subr.mxu0 0.0
    %1206 = vmatpush1.xpose.msra.mxu0 0.0
    %1207 = vmatprep.subr.mxu0 0.0
    %1208 = vmatpush1.xpose.msra.mxu0 0.0
    %1209 = vmatprep.subr.mxu0 0.0
    %1210 = vmatpush1.xpose.msra.mxu0 0.0
    %1211 = vmatprep.subr.mxu0 0.0
    %1212 = vmatpush1.xpose.msra.mxu0 0.0
    %1213 = vmatprep.subr.mxu0 0.0
    %1214 = vmatpush1.xpose.msra.mxu0 0.0
    %1215 = vmatprep.subr.mxu0 0.0
    %1216 = vmatpush1.xpose.msra.mxu0 0.0
    %1217 = vmatprep.subr.mxu0 0.0
    %1218 = vmatpush1.xpose.msra.mxu0 0.0
    %1219 = vmatprep.subr.mxu0 0.0
    %1220 = vmatpush1.xpose.msra.mxu0 0.0
    %1221 = vmatprep.subr.mxu0 0.0
    %1222 = vmatpush1.xpose.msra.mxu0 0.0
    %1223 = vmatprep.subr.mxu0 0.0
    %1224 = vmatpush1.xpose.msra.mxu0 0.0
    %1225 = vmatprep.subr.mxu0 0.0
    %1226 = vmatpush1.xpose.msra.mxu0 0.0
    %1227 = vmatprep.subr.mxu0 0.0
    %1228 = vmatpush1.xpose.msra.mxu0 0.0
    %1229 = vmatprep.subr.mxu0 0.0
    %1230 = vmatpush1.xpose.msra.mxu0 0.0
    %1231 = vmatprep.subr.mxu0 0.0
    %1232 = vmatpush1.xpose.msra.mxu0 0.0
    %1233 = vmatprep.subr.mxu0 0.0
    %1234 = vmatpush1.xpose.msra.mxu0 0.0
    %1235 = vmatprep.subr.mxu0 0.0
    %1236 = vmatpush1.xpose.msra.mxu0 0.0
    %1237 = vmatprep.subr.mxu0 0.0
    %1238 = vmatpush1.xpose.msra.mxu0 0.0
    %1239 = vmatprep.subr.mxu0 0.0
    %1240 = vmatpush1.xpose.msra.mxu0 0.0
    %1241 = vmatprep.subr.mxu0 0.0
    %1242 = vmatpush1.xpose.msra.mxu0 0.0
    %1243 = vmatprep.subr.mxu0 0.0
    %1244 = vmatpush1.xpose.msra.mxu0 0.0
    %1245 = vmatprep.subr.mxu0 0.0
    %1246 = vmatpush1.xpose.msra.mxu0 0.0
    %1247 = vmatprep.subr.mxu0 0.0
    %1248 = vmatpush1.xpose.msra.mxu0 0.0
    %1249 = vmatprep.subr.mxu0 0.0
    %1250 = vmatpush1.xpose.msra.mxu0 0.0
    %1251 = vmatprep.subr.mxu0 0.0
    %1252 = vmatpush1.xpose.msra.mxu0 0.0
    %1253 = vmatprep.subr.mxu0 0.0
    %1254 = vmatpush1.xpose.msra.mxu0 0.0
    %1255 = vmatprep.subr.mxu0 0.0
    %1256 = vmatpush1.xpose.msra.mxu0 0.0
    %1257 = vmatprep.subr.mxu0 0.0
    %1258 = vmatpush1.xpose.msra.mxu0 0.0
    %1259 = vmatprep.subr.mxu0 0.0
    %1260 = vmatpush1.xpose.msra.mxu0 0.0
    %1261 = vmatprep.subr.mxu0 0.0
    %1262 = vmatpush1.xpose.msra.mxu0 0.0
    %1263 = vmatprep.mubr.f32.mxu0 0.0
    %1264 = vmatmul.mubr.f32.gmra.mrb[0].mxu0 %v1195
    %v1265 = vpop.f32.mrb[0].mxu0
    %v1266 = vadd.f32 %v476, %v1265
    %v1267 = vpop.f32.mrb[0].mxu0
    %1268 = vdwg.mxu0
    %v1269 = vsel %vm477, %v1266, -inf
    %1270 = vmax.xlane.f32.xlu0 %v1269
    %v1271 = vpop.xlane.xlu0 %1270
    %v1272 = vsub.f32 %v1266, %v1271
    %v1273 = vmul.f32 %v1272, 1.442695
    %v1274 = vpow.pop %v1273
    %v1275 = vsel %vm477, %v1274, 0.0
    %1276 = vadd.xlane.f32.xlu0 %v1275
    %v1277 = vpop.xlane.xlu0 %1276
    %v1278 = vrcp.pop %v1277
    %v1279 = vmul.f32 %v1274, %v1278
    %1280 = vrot.lane.b32.xlu0 %v393, 104
    %v1281 = vpop.permute.xlu0 %1280
    %v1284 = vsel %vm477, %v1279, 0
    %1286 = vmatprep.subr.mxu0 0.0
    %1287 = vmatpush1.msra.mxu0 %v1281
    %1288 = vmatprep.subr.mxu0 0.0
    %1289 = vmatpush1.msra.mxu0 0.0
    %1290 = vmatprep.subr.mxu0 0.0
    %1291 = vmatpush1.msra.mxu0 0.0
    %1292 = vmatprep.subr.mxu0 0.0
    %1293 = vmatpush1.msra.mxu0 0.0
    %1294 = vmatprep.subr.mxu0 0.0
    %1295 = vmatpush1.msra.mxu0 0.0
    %1296 = vmatprep.subr.mxu0 0.0
    %1297 = vmatpush1.msra.mxu0 0.0
    %1298 = vmatprep.subr.mxu0 0.0
    %1299 = vmatpush1.msra.mxu0 0.0
    %1300 = vmatprep.subr.mxu0 0.0
    %1301 = vmatpush1.msra.mxu0 0.0
    %1302 = vmatprep.subr.mxu0 0.0
    %1303 = vmatpush1.msra.mxu0 0.0
    %1304 = vmatprep.subr.mxu0 0.0
    %1305 = vmatpush1.msra.mxu0 0.0
    %1306 = vmatprep.subr.mxu0 0.0
    %1307 = vmatpush1.msra.mxu0 0.0
    %1308 = vmatprep.subr.mxu0 0.0
    %1309 = vmatpush1.msra.mxu0 0.0
    %1310 = vmatprep.subr.mxu0 0.0
    %1311 = vmatpush1.msra.mxu0 0.0
    %1312 = vmatprep.subr.mxu0 0.0
    %1313 = vmatpush1.msra.mxu0 0.0
    %1314 = vmatprep.subr.mxu0 0.0
    %1315 = vmatpush1.msra.mxu0 0.0
    %1316 = vmatprep.subr.mxu0 0.0
    %1317 = vmatpush1.msra.mxu0 0.0
    %1318 = vmatprep.subr.mxu0 0.0
    %1319 = vmatpush1.msra.mxu0 0.0
    %1320 = vmatprep.subr.mxu0 0.0
    %1321 = vmatpush1.msra.mxu0 0.0
    %1322 = vmatprep.subr.mxu0 0.0
    %1323 = vmatpush1.msra.mxu0 0.0
    %1324 = vmatprep.subr.mxu0 0.0
    %1325 = vmatpush1.msra.mxu0 0.0
    %1326 = vmatprep.subr.mxu0 0.0
    %1327 = vmatpush1.msra.mxu0 0.0
    %1328 = vmatprep.subr.mxu0 0.0
    %1329 = vmatpush1.msra.mxu0 0.0
    %1330 = vmatprep.subr.mxu0 0.0
    %1331 = vmatpush1.msra.mxu0 0.0
    %1332 = vmatprep.subr.mxu0 0.0
    %1333 = vmatpush1.msra.mxu0 0.0
    %1334 = vmatprep.subr.mxu0 0.0
    %1335 = vmatpush1.msra.mxu0 0.0
    %1336 = vmatprep.subr.mxu0 0.0
    %1337 = vmatpush1.msra.mxu0 0.0
    %1338 = vmatprep.subr.mxu0 0.0
    %1339 = vmatpush1.msra.mxu0 0.0
    %1340 = vmatprep.subr.mxu0 0.0
    %1341 = vmatpush1.msra.mxu0 0.0
    %1342 = vmatprep.subr.mxu0 0.0
    %1343 = vmatpush1.msra.mxu0 0.0
    %1344 = vmatprep.subr.mxu0 0.0
    %1345 = vmatpush1.msra.mxu0 0.0
    %1346 = vmatprep.subr.mxu0 0.0
    %1347 = vmatpush1.msra.mxu0 0.0
    %1348 = vmatprep.subr.mxu0 0.0
    %1349 = vmatpush1.msra.mxu0 0.0
    %1350 = vmatprep.mubr.f32.mxu0 0.0
    %1351 = vmatmul.mubr.f32.gmra.mrb[0].mxu0 %v1284
    %v1352 = vpop.f32.mrb[0].mxu0
    %v1353 = vadd.f32 0.0, %v1352
    %v1354 = vpop.f32.mrb[0].mxu0
    %1355 = vdwg.mxu0
    %v1357 = vsel %vm477, %v1353, 0
    %1359 = vmatprep.subr.mxu0 0.0
    %1360 = vmatpush1.msra.mxu0 %v144
    %1361 = vmatprep.subr.mxu0 0.0
    %1362 = vmatpush1.msra.mxu0 0.0
    %1363 = vmatprep.subr.mxu0 0.0
    %1364 = vmatpush1.msra.mxu0 0.0
    %1365 = vmatprep.subr.mxu0 0.0
    %1366 = vmatpush1.msra.mxu0 0.0
    %1367 = vmatprep.subr.mxu0 0.0
    %1368 = vmatpush1.msra.mxu0 0.0
    %1369 = vmatprep.subr.mxu0 0.0
    %1370 = vmatpush1.msra.mxu0 0.0
    %1371 = vmatprep.subr.mxu0 0.0
    %1372 = vmatpush1.msra.mxu0 0.0
    %1373 = vmatprep.subr.mxu0 0.0
    %1374 = vmatpush1.msra.mxu0 0.0
    %1375 = vmatprep.subr.mxu0 0.0
    %1376 = vmatpush1.msra.mxu0 0.0
    %1377 = vmatprep.subr.mxu0 0.0
    %1378 = vmatpush1.msra.mxu0 0.0
    %1379 = vmatprep.subr.mxu0 0.0
    %1380 = vmatpush1.msra.mxu0 0.0
    %1381 = vmatprep.subr.mxu0 0.0
    %1382 = vmatpush1.msra.mxu0 0.0
    %1383 = vmatprep.subr.mxu0 0.0
    %1384 = vmatpush1.msra.mxu0 0.0
    %1385 = vmatprep.subr.mxu0 0.0
    %1386 = vmatpush1.msra.mxu0 0.0
    %1387 = vmatprep.subr.mxu0 0.0
    %1388 = vmatpush1.msra.mxu0 0.0
    %1389 = vmatprep.subr.mxu0 0.0
    %1390 = vmatpush1.msra.mxu0 0.0
    %1391 = vmatprep.subr.mxu0 0.0
    %1392 = vmatpush1.msra.mxu0 0.0
    %1393 = vmatprep.subr.mxu0 0.0
    %1394 = vmatpush1.msra.mxu0 0.0
    %1395 = vmatprep.subr.mxu0 0.0
    %1396 = vmatpush1.msra.mxu0 0.0
    %1397 = vmatprep.subr.mxu0 0.0
    %1398 = vmatpush1.msra.mxu0 0.0
    %1399 = vmatprep.subr.mxu0 0.0
    %1400 = vmatpush1.msra.mxu0 0.0
    %1401 = vmatprep.subr.mxu0 0.0
    %1402 = vmatpush1.msra.mxu0 0.0
    %1403 = vmatprep.subr.mxu0 0.0
    %1404 = vmatpush1.msra.mxu0 0.0
    %1405 = vmatprep.subr.mxu0 0.0
    %1406 = vmatpush1.msra.mxu0 0.0
    %1407 = vmatprep.subr.mxu0 0.0
    %1408 = vmatpush1.msra.mxu0 0.0
    %1409 = vmatprep.subr.mxu0 0.0
    %1410 = vmatpush1.msra.mxu0 0.0
    %1411 = vmatprep.subr.mxu0 0.0
    %1412 = vmatpush1.msra.mxu0 0.0
    %1413 = vmatprep.subr.mxu0 0.0
    %1414 = vmatpush1.msra.mxu0 0.0
    %1415 = vmatprep.subr.mxu0 0.0
    %1416 = vmatpush1.msra.mxu0 0.0
    %1417 = vmatprep.subr.mxu0 0.0
    %1418 = vmatpush1.msra.mxu0 0.0
    %1419 = vmatprep.subr.mxu0 0.0
    %1420 = vmatpush1.msra.mxu0 0.0
    %1421 = vmatprep.subr.mxu0 0.0
    %1422 = vmatpush1.msra.mxu0 0.0
    %1423 = vmatprep.mubr.f32.mxu0 0.0
    %1424 = vmatmul.mubr.f32.gmra.mrb[0].mxu0 %v1357
    %v1425 = vpop.f32.mrb[0].mxu0
    %v1426 = vadd.f32 0.0, %v1425
    %v1427 = vpop.f32.mrb[0].mxu0
    %1428 = vdwg.mxu0
    %v1429 = vadd.f32 %v1190, %v1426
    %1430 = vrot.lane.b32.xlu0 %v564, 32
    %v1431 = vpop.permute.xlu0 %1430
    %1433 = vrot.lane.b32.xlu0 %v726, 40
    %v1434 = vpop.permute.xlu0 %1433
    %1436 = vrot.lane.b32.xlu0 %v1040, 48
    %v1437 = vpop.permute.xlu0 %1436
    %1439 = vrot.lane.b32.xlu0 %v1279, 56
    %v1440 = vpop.permute.xlu0 %1439
    %v1442 = vsel %vm149, %v1429, %v1431
    %vm1443 = vcmask 326656
    %v1444 = vsel %vm1443, %v1442, %v1434
    %vm1445 = vcmask 392192
    %v1446 = vsel %vm1445, %v1444, %v1437
    %vm1447 = vcmask 457728
    %v1448 = vsel %vm1447, %v1446, %v1440
    %vm1449 = vcmask 523264
    %1450 = vst.msk [vmem:[%s10] sm:$0xff] %vm1449, %v1448
    %v1451 = vlaneseq
    %v1452 = vshrl.u32 %v1451, 7
    %v1453 = vsub.s32 1, %v1452
    %v1454 = vrot.slane %v140, %v1453
    %v1456 = vsel %vm477, %v422, 0
    %v1459 = vsel %vm477, %v458, 0
    %1461 = vmatprep.subr.mxu0 0.0
    %1462 = vmatpush1.xpose.msra.mxu0 %v1459
    %1463 = vmatprep.subr.mxu0 0.0
    %1464 = vmatpush1.xpose.msra.mxu0 0.0
    %1465 = vmatprep.subr.mxu0 0.0
    %1466 = vmatpush1.xpose.msra.mxu0 0.0
    %1467 = vmatprep.subr.mxu0 0.0
    %1468 = vmatpush1.xpose.msra.mxu0 0.0
    %1469 = vmatprep.subr.mxu0 0.0
    %1470 = vmatpush1.xpose.msra.mxu0 0.0
    %1471 = vmatprep.subr.mxu0 0.0
    %1472 = vmatpush1.xpose.msra.mxu0 0.0
    %1473 = vmatprep.subr.mxu0 0.0
    %1474 = vmatpush1.xpose.msra.mxu0 0.0
    %1475 = vmatprep.subr.mxu0 0.0
    %1476 = vmatpush1.xpose.msra.mxu0 0.0
    %1477 = vmatprep.subr.mxu0 0.0
    %1478 = vmatpush1.xpose.msra.mxu0 0.0
    %1479 = vmatprep.subr.mxu0 0.0
    %1480 = vmatpush1.xpose.msra.mxu0 0.0
    %1481 = vmatprep.subr.mxu0 0.0
    %1482 = vmatpush1.xpose.msra.mxu0 0.0
    %1483 = vmatprep.subr.mxu0 0.0
    %1484 = vmatpush1.xpose.msra.mxu0 0.0
    %1485 = vmatprep.subr.mxu0 0.0
    %1486 = vmatpush1.xpose.msra.mxu0 0.0
    %1487 = vmatprep.subr.mxu0 0.0
    %1488 = vmatpush1.xpose.msra.mxu0 0.0
    %1489 = vmatprep.subr.mxu0 0.0
    %1490 = vmatpush1.xpose.msra.mxu0 0.0
    %1491 = vmatprep.subr.mxu0 0.0
    %1492 = vmatpush1.xpose.msra.mxu0 0.0
    %1493 = vmatprep.subr.mxu0 0.0
    %1494 = vmatpush1.xpose.msra.mxu0 0.0
    %1495 = vmatprep.subr.mxu0 0.0
    %1496 = vmatpush1.xpose.msra.mxu0 0.0
    %1497 = vmatprep.subr.mxu0 0.0
    %1498 = vmatpush1.xpose.msra.mxu0 0.0
    %1499 = vmatprep.subr.mxu0 0.0
    %1500 = vmatpush1.xpose.msra.mxu0 0.0
    %1501 = vmatprep.subr.mxu0 0.0
    %1502 = vmatpush1.xpose.msra.mxu0 0.0
    %1503 = vmatprep.subr.mxu0 0.0
    %1504 = vmatpush1.xpose.msra.mxu0 0.0
    %1505 = vmatprep.subr.mxu0 0.0
    %1506 = vmatpush1.xpose.msra.mxu0 0.0
    %1507 = vmatprep.subr.mxu0 0.0
    %1508 = vmatpush1.xpose.msra.mxu0 0.0
    %1509 = vmatprep.subr.mxu0 0.0
    %1510 = vmatpush1.xpose.msra.mxu0 0.0
    %1511 = vmatprep.subr.mxu0 0.0
    %1512 = vmatpush1.xpose.msra.mxu0 0.0
    %1513 = vmatprep.subr.mxu0 0.0
    %1514 = vmatpush1.xpose.msra.mxu0 0.0
    %1515 = vmatprep.subr.mxu0 0.0
    %1516 = vmatpush1.xpose.msra.mxu0 0.0
    %1517 = vmatprep.subr.mxu0 0.0
    %1518 = vmatpush1.xpose.msra.mxu0 0.0
    %1519 = vmatprep.subr.mxu0 0.0
    %1520 = vmatpush1.xpose.msra.mxu0 0.0
    %1521 = vmatprep.subr.mxu0 0.0
    %1522 = vmatpush1.xpose.msra.mxu0 0.0
    %1523 = vmatprep.subr.mxu0 0.0
    %1524 = vmatpush1.xpose.msra.mxu0 0.0
    %1525 = vmatprep.mubr.f32.mxu0 0.0
    %1526 = vmatmul.mubr.f32.gmra.mrb[0].mxu0 %v1456
    %v1527 = vpop.f32.mrb[0].mxu0
    %v1528 = vadd.f32 %v1454, %v1527
    %v1529 = vpop.f32.mrb[0].mxu0
    %1530 = vdwg.mxu0
    %v1531 = vsel %vm477, %v1528, -inf
    %1532 = vmax.xlane.f32.xlu0 %v1531
    %v1533 = vpop.xlane.xlu0 %1532
    %v1534 = vsub.f32 %v1528, %v1533
    %v1535 = vmul.f32 %v1534, 1.442695
    %v1536 = vpow.pop %v1535
    %v1537 = vsel %vm477, %v1536, 0.0
    %1538 = vadd.xlane.f32.xlu0 %v1537
    %v1539 = vpop.xlane.xlu0 %1538
    %v1540 = vrcp.pop %v1539
    %v1541 = vmul.f32 %v1536, %v1540
    %v1543 = vsel %vm477, %v1541, 0
    %1545 = vmatprep.subr.mxu0 0.0
    %1546 = vmatpush1.msra.mxu0 %v398
    %1547 = vmatprep.subr.mxu0 0.0
    %1548 = vmatpush1.msra.mxu0 0.0
    %1549 = vmatprep.subr.mxu0 0.0
    %1550 = vmatpush1.msra.mxu0 0.0
    %1551 = vmatprep.subr.mxu0 0.0
    %1552 = vmatpush1.msra.mxu0 0.0
    %1553 = vmatprep.subr.mxu0 0.0
    %1554 = vmatpush1.msra.mxu0 0.0
    %1555 = vmatprep.subr.mxu0 0.0
    %1556 = vmatpush1.msra.mxu0 0.0
    %1557 = vmatprep.subr.mxu0 0.0
    %1558 = vmatpush1.msra.mxu0 0.0
    %1559 = vmatprep.subr.mxu0 0.0
    %1560 = vmatpush1.msra.mxu0 0.0
    %1561 = vmatprep.subr.mxu0 0.0
    %1562 = vmatpush1.msra.mxu0 0.0
    %1563 = vmatprep.subr.mxu0 0.0
    %1564 = vmatpush1.msra.mxu0 0.0
    %1565 = vmatprep.subr.mxu0 0.0
    %1566 = vmatpush1.msra.mxu0 0.0
    %1567 = vmatprep.subr.mxu0 0.0
    %1568 = vmatpush1.msra.mxu0 0.0
    %1569 = vmatprep.subr.mxu0 0.0
    %1570 = vmatpush1.msra.mxu0 0.0
    %1571 = vmatprep.subr.mxu0 0.0
    %1572 = vmatpush1.msra.mxu0 0.0
    %1573 = vmatprep.subr.mxu0 0.0
    %1574 = vmatpush1.msra.mxu0 0.0
    %1575 = vmatprep.subr.mxu0 0.0
    %1576 = vmatpush1.msra.mxu0 0.0
    %1577 = vmatprep.subr.mxu0 0.0
    %1578 = vmatpush1.msra.mxu0 0.0
    %1579 = vmatprep.subr.mxu0 0.0
    %1580 = vmatpush1.msra.mxu0 0.0
    %1581 = vmatprep.subr.mxu0 0.0
    %1582 = vmatpush1.msra.mxu0 0.0
    %1583 = vmatprep.subr.mxu0 0.0
    %1584 = vmatpush1.msra.mxu0 0.0
    %1585 = vmatprep.subr.mxu0 0.0
    %1586 = vmatpush1.msra.mxu0 0.0
    %1587 = vmatprep.subr.mxu0 0.0
    %1588 = vmatpush1.msra.mxu0 0.0
    %1589 = vmatprep.subr.mxu0 0.0
    %1590 = vmatpush1.msra.mxu0 0.0
    %1591 = vmatprep.subr.mxu0 0.0
    %1592 = vmatpush1.msra.mxu0 0.0
    %1593 = vmatprep.subr.mxu0 0.0
    %1594 = vmatpush1.msra.mxu0 0.0
    %1595 = vmatprep.subr.mxu0 0.0
    %1596 = vmatpush1.msra.mxu0 0.0
    %1597 = vmatprep.subr.mxu0 0.0
    %1598 = vmatpush1.msra.mxu0 0.0
    %1599 = vmatprep.subr.mxu0 0.0
    %1600 = vmatpush1.msra.mxu0 0.0
    %1601 = vmatprep.subr.mxu0 0.0
    %1602 = vmatpush1.msra.mxu0 0.0
    %1603 = vmatprep.subr.mxu0 0.0
    %1604 = vmatpush1.msra.mxu0 0.0
    %1605 = vmatprep.subr.mxu0 0.0
    %1606 = vmatpush1.msra.mxu0 0.0
    %1607 = vmatprep.subr.mxu0 0.0
    %1608 = vmatpush1.msra.mxu0 0.0
    %1609 = vmatprep.mubr.f32.mxu0 0.0
    %1610 = vmatmul.mubr.f32.gmra.mrb[0].mxu0 %v1543
    %v1611 = vpop.f32.mrb[0].mxu0
    %v1612 = vadd.f32 0.0, %v1611
    %v1613 = vpop.f32.mrb[0].mxu0
    %1614 = vdwg.mxu0
    %1615 = vrot.lane.b32.xlu0 %v422, 120
    %v1616 = vpop.permute.xlu0 %1615
    %1617 = vrot.lane.b32.xlu0 %v458, 120
    %v1618 = vpop.permute.xlu0 %1617
    %v1619 = vsel %vm477, %v1616, 0
    %v1621 = vsel %vm477, %v1618, 0
    %1623 = vmatprep.subr.mxu0 0.0
    %1624 = vmatpush1.xpose.msra.mxu0 %v1621
    %1625 = vmatprep.subr.mxu0 0.0
    %1626 = vmatpush1.xpose.msra.mxu0 0.0
    %1627 = vmatprep.subr.mxu0 0.0
    %1628 = vmatpush1.xpose.msra.mxu0 0.0
    %1629 = vmatprep.subr.mxu0 0.0
    %1630 = vmatpush1.xpose.msra.mxu0 0.0
    %1631 = vmatprep.subr.mxu0 0.0
    %1632 = vmatpush1.xpose.msra.mxu0 0.0
    %1633 = vmatprep.subr.mxu0 0.0
    %1634 = vmatpush1.xpose.msra.mxu0 0.0
    %1635 = vmatprep.subr.mxu0 0.0
    %1636 = vmatpush1.xpose.msra.mxu0 0.0
    %1637 = vmatprep.subr.mxu0 0.0
    %1638 = vmatpush1.xpose.msra.mxu0 0.0
    %1639 = vmatprep.subr.mxu0 0.0
    %1640 = vmatpush1.xpose.msra.mxu0 0.0
    %1641 = vmatprep.subr.mxu0 0.0
    %1642 = vmatpush1.xpose.msra.mxu0 0.0
    %1643 = vmatprep.subr.mxu0 0.0
    %1644 = vmatpush1.xpose.msra.mxu0 0.0
    %1645 = vmatprep.subr.mxu0 0.0
    %1646 = vmatpush1.xpose.msra.mxu0 0.0
    %1647 = vmatprep.subr.mxu0 0.0
    %1648 = vmatpush1.xpose.msra.mxu0 0.0
    %1649 = vmatprep.subr.mxu0 0.0
    %1650 = vmatpush1.xpose.msra.mxu0 0.0
    %1651 = vmatprep.subr.mxu0 0.0
    %1652 = vmatpush1.xpose.msra.mxu0 0.0
    %1653 = vmatprep.subr.mxu0 0.0
    %1654 = vmatpush1.xpose.msra.mxu0 0.0
    %1655 = vmatprep.subr.mxu0 0.0
    %1656 = vmatpush1.xpose.msra.mxu0 0.0
    %1657 = vmatprep.subr.mxu0 0.0
    %1658 = vmatpush1.xpose.msra.mxu0 0.0
    %1659 = vmatprep.subr.mxu0 0.0
    %1660 = vmatpush1.xpose.msra.mxu0 0.0
    %1661 = vmatprep.subr.mxu0 0.0
    %1662 = vmatpush1.xpose.msra.mxu0 0.0
    %1663 = vmatprep.subr.mxu0 0.0
    %1664 = vmatpush1.xpose.msra.mxu0 0.0
    %1665 = vmatprep.subr.mxu0 0.0
    %1666 = vmatpush1.xpose.msra.mxu0 0.0
    %1667 = vmatprep.subr.mxu0 0.0
    %1668 = vmatpush1.xpose.msra.mxu0 0.0
    %1669 = vmatprep.subr.mxu0 0.0
    %1670 = vmatpush1.xpose.msra.mxu0 0.0
    %1671 = vmatprep.subr.mxu0 0.0
    %1672 = vmatpush1.xpose.msra.mxu0 0.0
    %1673 = vmatprep.subr.mxu0 0.0
    %1674 = vmatpush1.xpose.msra.mxu0 0.0
    %1675 = vmatprep.subr.mxu0 0.0
    %1676 = vmatpush1.xpose.msra.mxu0 0.0
    %1677 = vmatprep.subr.mxu0 0.0
    %1678 = vmatpush1.xpose.msra.mxu0 0.0
    %1679 = vmatprep.subr.mxu0 0.0
    %1680 = vmatpush1.xpose.msra.mxu0 0.0
    %1681 = vmatprep.subr.mxu0 0.0
    %1682 = vmatpush1.xpose.msra.mxu0 0.0
    %1683 = vmatprep.subr.mxu0 0.0
    %1684 = vmatpush1.xpose.msra.mxu0 0.0
    %1685 = vmatprep.subr.mxu0 0.0
    %1686 = vmatpush1.xpose.msra.mxu0 0.0
    %1687 = vmatprep.mubr.f32.mxu0 0.0
    %1688 = vmatmul.mubr.f32.gmra.mrb[0].mxu0 %v1619
    %v1689 = vpop.f32.mrb[0].mxu0
    %v1690 = vadd.f32 %v1454, %v1689
    %v1691 = vpop.f32.mrb[0].mxu0
    %1692 = vdwg.mxu0
    %v1693 = vsel %vm477, %v1690, -inf
    %1694 = vmax.xlane.f32.xlu0 %v1693
    %v1695 = vpop.xlane.xlu0 %1694
    %v1696 = vsub.f32 %v1690, %v1695
    %v1697 = vmul.f32 %v1696, 1.442695
    %v1698 = vpow.pop %v1697
    %v1699 = vsel %vm477, %v1698, 0.0
    %1700 = vadd.xlane.f32.xlu0 %v1699
    %v1701 = vpop.xlane.xlu0 %1700
    %v1702 = vrcp.pop %v1701
    %v1703 = vmul.f32 %v1698, %v1702
    %1705 = vrot.lane.b32.xlu0 %v398, 120
    %v1706 = vpop.permute.xlu0 %1705
    %v1709 = vsel %vm477, %v1703, 0
    %1711 = vmatprep.subr.mxu0 0.0
    %1712 = vmatpush1.msra.mxu0 %v1706
    %1713 = vmatprep.subr.mxu0 0.0
    %1714 = vmatpush1.msra.mxu0 0.0
    %1715 = vmatprep.subr.mxu0 0.0
    %1716 = vmatpush1.msra.mxu0 0.0
    %1717 = vmatprep.subr.mxu0 0.0
    %1718 = vmatpush1.msra.mxu0 0.0
    %1719 = vmatprep.subr.mxu0 0.0
    %1720 = vmatpush1.msra.mxu0 0.0
    %1721 = vmatprep.subr.mxu0 0.0
    %1722 = vmatpush1.msra.mxu0 0.0
    %1723 = vmatprep.subr.mxu0 0.0
    %1724 = vmatpush1.msra.mxu0 0.0
    %1725 = vmatprep.subr.mxu0 0.0
    %1726 = vmatpush1.msra.mxu0 0.0
    %1727 = vmatprep.subr.mxu0 0.0
    %1728 = vmatpush1.msra.mxu0 0.0
    %1729 = vmatprep.subr.mxu0 0.0
    %1730 = vmatpush1.msra.mxu0 0.0
    %1731 = vmatprep.subr.mxu0 0.0
    %1732 = vmatpush1.msra.mxu0 0.0
    %1733 = vmatprep.subr.mxu0 0.0
    %1734 = vmatpush1.msra.mxu0 0.0
    %1735 = vmatprep.subr.mxu0 0.0
    %1736 = vmatpush1.msra.mxu0 0.0
    %1737 = vmatprep.subr.mxu0 0.0
    %1738 = vmatpush1.msra.mxu0 0.0
    %1739 = vmatprep.subr.mxu0 0.0
    %1740 = vmatpush1.msra.mxu0 0.0
    %1741 = vmatprep.subr.mxu0 0.0
    %1742 = vmatpush1.msra.mxu0 0.0
    %1743 = vmatprep.subr.mxu0 0.0
    %1744 = vmatpush1.msra.mxu0 0.0
    %1745 = vmatprep.subr.mxu0 0.0
    %1746 = vmatpush1.msra.mxu0 0.0
    %1747 = vmatprep.subr.mxu0 0.0
    %1748 = vmatpush1.msra.mxu0 0.0
    %1749 = vmatprep.subr.mxu0 0.0
    %1750 = vmatpush1.msra.mxu0 0.0
    %1751 = vmatprep.subr.mxu0 0.0
    %1752 = vmatpush1.msra.mxu0 0.0
    %1753 = vmatprep.subr.mxu0 0.0
    %1754 = vmatpush1.msra.mxu0 0.0
    %1755 = vmatprep.subr.mxu0 0.0
    %1756 = vmatpush1.msra.mxu0 0.0
    %1757 = vmatprep.subr.mxu0 0.0
    %1758 = vmatpush1.msra.mxu0 0.0
    %1759 = vmatprep.subr.mxu0 0.0
    %1760 = vmatpush1.msra.mxu0 0.0
    %1761 = vmatprep.subr.mxu0 0.0
    %1762 = vmatpush1.msra.mxu0 0.0
    %1763 = vmatprep.subr.mxu0 0.0
    %1764 = vmatpush1.msra.mxu0 0.0
    %1765 = vmatprep.subr.mxu0 0.0
    %1766 = vmatpush1.msra.mxu0 0.0
    %1767 = vmatprep.subr.mxu0 0.0
    %1768 = vmatpush1.msra.mxu0 0.0
    %1769 = vmatprep.subr.mxu0 0.0
    %1770 = vmatpush1.msra.mxu0 0.0
    %1771 = vmatprep.subr.mxu0 0.0
    %1772 = vmatpush1.msra.mxu0 0.0
    %1773 = vmatprep.subr.mxu0 0.0
    %1774 = vmatpush1.msra.mxu0 0.0
    %1775 = vmatprep.mubr.f32.mxu0 0.0
    %1776 = vmatmul.mubr.f32.gmra.mrb[0].mxu0 %v1709
    %v1777 = vpop.f32.mrb[0].mxu0
    %v1778 = vadd.f32 0.0, %v1777
    %v1779 = vpop.f32.mrb[0].mxu0
    %1780 = vdwg.mxu0
    %v1782 = vsel %vm477, %v1778, 0
    %1784 = vmatprep.subr.mxu0 0.0
    %1785 = vmatpush1.msra.mxu0 %v142
    %1786 = vmatprep.subr.mxu0 0.0
    %1787 = vmatpush1.msra.mxu0 0.0
    %1788 = vmatprep.subr.mxu0 0.0
    %1789 = vmatpush1.msra.mxu0 0.0
    %1790 = vmatprep.subr.mxu0 0.0
    %1791 = vmatpush1.msra.mxu0 0.0
    %1792 = vmatprep.subr.mxu0 0.0
    %1793 = vmatpush1.msra.mxu0 0.0
    %1794 = vmatprep.subr.mxu0 0.0
    %1795 = vmatpush1.msra.mxu0 0.0
    %1796 = vmatprep.subr.mxu0 0.0
    %1797 = vmatpush1.msra.mxu0 0.0
    %1798 = vmatprep.subr.mxu0 0.0
    %1799 = vmatpush1.msra.mxu0 0.0
    %1800 = vmatprep.subr.mxu0 0.0
    %1801 = vmatpush1.msra.mxu0 0.0
    %1802 = vmatprep.subr.mxu0 0.0
    %1803 = vmatpush1.msra.mxu0 0.0
    %1804 = vmatprep.subr.mxu0 0.0
    %1805 = vmatpush1.msra.mxu0 0.0
    %1806 = vmatprep.subr.mxu0 0.0
    %1807 = vmatpush1.msra.mxu0 0.0
    %1808 = vmatprep.subr.mxu0 0.0
    %1809 = vmatpush1.msra.mxu0 0.0
    %1810 = vmatprep.subr.mxu0 0.0
    %1811 = vmatpush1.msra.mxu0 0.0
    %1812 = vmatprep.subr.mxu0 0.0
    %1813 = vmatpush1.msra.mxu0 0.0
    %1814 = vmatprep.subr.mxu0 0.0
    %1815 = vmatpush1.msra.mxu0 0.0
    %1816 = vmatprep.subr.mxu0 0.0
    %1817 = vmatpush1.msra.mxu0 0.0
    %1818 = vmatprep.subr.mxu0 0.0
    %1819 = vmatpush1.msra.mxu0 0.0
    %1820 = vmatprep.subr.mxu0 0.0
    %1821 = vmatpush1.msra.mxu0 0.0
    %1822 = vmatprep.subr.mxu0 0.0
    %1823 = vmatpush1.msra.mxu0 0.0
    %1824 = vmatprep.subr.mxu0 0.0
    %1825 = vmatpush1.msra.mxu0 0.0
    %1826 = vmatprep.subr.mxu0 0.0
    %1827 = vmatpush1.msra.mxu0 0.0
    %1828 = vmatprep.subr.mxu0 0.0
    %1829 = vmatpush1.msra.mxu0 0.0
    %1830 = vmatprep.subr.mxu0 0.0
    %1831 = vmatpush1.msra.mxu0 0.0
    %1832 = vmatprep.subr.mxu0 0.0
    %1833 = vmatpush1.msra.mxu0 0.0
    %1834 = vmatprep.subr.mxu0 0.0
    %1835 = vmatpush1.msra.mxu0 0.0
    %1836 = vmatprep.subr.mxu0 0.0
    %1837 = vmatpush1.msra.mxu0 0.0
    %1838 = vmatprep.subr.mxu0 0.0
    %1839 = vmatpush1.msra.mxu0 0.0
    %1840 = vmatprep.subr.mxu0 0.0
    %1841 = vmatpush1.msra.mxu0 0.0
    %1842 = vmatprep.subr.mxu0 0.0
    %1843 = vmatpush1.msra.mxu0 0.0
    %1844 = vmatprep.subr.mxu0 0.0
    %1845 = vmatpush1.msra.mxu0 0.0
    %1846 = vmatprep.subr.mxu0 0.0
    %1847 = vmatpush1.msra.mxu0 0.0
    %1848 = vmatprep.mubr.f32.mxu0 0.0
    %1849 = vmatmul.mubr.f32.gmra.mrb[0].mxu0 %v1782
    %v1850 = vpop.f32.mrb[0].mxu0
    %v1851 = vadd.f32 0.0, %v1850
    %v1852 = vpop.f32.mrb[0].mxu0
    %1853 = vdwg.mxu0
    %v1855 = vsel %vm477, %v1612, 0
    %1857 = vmatprep.subr.mxu0 0.0
    %1858 = vmatpush1.msra.mxu0 %v141
    %1859 = vmatprep.subr.mxu0 0.0
    %1860 = vmatpush1.msra.mxu0 0.0
    %1861 = vmatprep.subr.mxu0 0.0
    %1862 = vmatpush1.msra.mxu0 0.0
    %1863 = vmatprep.subr.mxu0 0.0
    %1864 = vmatpush1.msra.mxu0 0.0
    %1865 = vmatprep.subr.mxu0 0.0
    %1866 = vmatpush1.msra.mxu0 0.0
    %1867 = vmatprep.subr.mxu0 0.0
    %1868 = vmatpush1.msra.mxu0 0.0
    %1869 = vmatprep.subr.mxu0 0.0
    %1870 = vmatpush1.msra.mxu0 0.0
    %1871 = vmatprep.subr.mxu0 0.0
    %1872 = vmatpush1.msra.mxu0 0.0
    %1873 = vmatprep.subr.mxu0 0.0
    %1874 = vmatpush1.msra.mxu0 0.0
    %1875 = vmatprep.subr.mxu0 0.0
    %1876 = vmatpush1.msra.mxu0 0.0
    %1877 = vmatprep.subr.mxu0 0.0
    %1878 = vmatpush1.msra.mxu0 0.0
    %1879 = vmatprep.subr.mxu0 0.0
    %1880 = vmatpush1.msra.mxu0 0.0
    %1881 = vmatprep.subr.mxu0 0.0
    %1882 = vmatpush1.msra.mxu0 0.0
    %1883 = vmatprep.subr.mxu0 0.0
    %1884 = vmatpush1.msra.mxu0 0.0
    %1885 = vmatprep.subr.mxu0 0.0
    %1886 = vmatpush1.msra.mxu0 0.0
    %1887 = vmatprep.subr.mxu0 0.0
    %1888 = vmatpush1.msra.mxu0 0.0
    %1889 = vmatprep.subr.mxu0 0.0
    %1890 = vmatpush1.msra.mxu0 0.0
    %1891 = vmatprep.subr.mxu0 0.0
    %1892 = vmatpush1.msra.mxu0 0.0
    %1893 = vmatprep.subr.mxu0 0.0
    %1894 = vmatpush1.msra.mxu0 0.0
    %1895 = vmatprep.subr.mxu0 0.0
    %1896 = vmatpush1.msra.mxu0 0.0
    %1897 = vmatprep.subr.mxu0 0.0
    %1898 = vmatpush1.msra.mxu0 0.0
    %1899 = vmatprep.subr.mxu0 0.0
    %1900 = vmatpush1.msra.mxu0 0.0
    %1901 = vmatprep.subr.mxu0 0.0
    %1902 = vmatpush1.msra.mxu0 0.0
    %1903 = vmatprep.subr.mxu0 0.0
    %1904 = vmatpush1.msra.mxu0 0.0
    %1905 = vmatprep.subr.mxu0 0.0
    %1906 = vmatpush1.msra.mxu0 0.0
    %1907 = vmatprep.subr.mxu0 0.0
    %1908 = vmatpush1.msra.mxu0 0.0
    %1909 = vmatprep.subr.mxu0 0.0
    %1910 = vmatpush1.msra.mxu0 0.0
    %1911 = vmatprep.subr.mxu0 0.0
    %1912 = vmatpush1.msra.mxu0 0.0
    %1913 = vmatprep.subr.mxu0 0.0
    %1914 = vmatpush1.msra.mxu0 0.0
    %1915 = vmatprep.subr.mxu0 0.0
    %1916 = vmatpush1.msra.mxu0 0.0
    %1917 = vmatprep.subr.mxu0 0.0
    %1918 = vmatpush1.msra.mxu0 0.0
    %1919 = vmatprep.subr.mxu0 0.0
    %1920 = vmatpush1.msra.mxu0 0.0
    %1921 = vmatprep.mubr.f32.mxu0 0.0
    %1922 = vmatmul.mubr.f32.gmra.mrb[0].mxu0 %v1855
    %v1923 = vpop.f32.mrb[0].mxu0
    %v1924 = vadd.f32 %v1851, %v1923
    %v1925 = vpop.f32.mrb[0].mxu0
    %1926 = vdwg.mxu0
    %1928 = vrot.lane.b32.xlu0 %v444, 112
    %v1929 = vpop.permute.xlu0 %1928
    %1931 = vrot.lane.b32.xlu0 %v472, 112
    %v1932 = vpop.permute.xlu0 %1931
    %v1933 = vsel %vm477, %v1929, 0
    %v1935 = vsel %vm477, %v1932, 0
    %1937 = vmatprep.subr.mxu0 0.0
    %1938 = vmatpush1.xpose.msra.mxu0 %v1935
    %1939 = vmatprep.subr.mxu0 0.0
    %1940 = vmatpush1.xpose.msra.mxu0 0.0
    %1941 = vmatprep.subr.mxu0 0.0
    %1942 = vmatpush1.xpose.msra.mxu0 0.0
    %1943 = vmatprep.subr.mxu0 0.0
    %1944 = vmatpush1.xpose.msra.mxu0 0.0
    %1945 = vmatprep.subr.mxu0 0.0
    %1946 = vmatpush1.xpose.msra.mxu0 0.0
    %1947 = vmatprep.subr.mxu0 0.0
    %1948 = vmatpush1.xpose.msra.mxu0 0.0
    %1949 = vmatprep.subr.mxu0 0.0
    %1950 = vmatpush1.xpose.msra.mxu0 0.0
    %1951 = vmatprep.subr.mxu0 0.0
    %1952 = vmatpush1.xpose.msra.mxu0 0.0
    %1953 = vmatprep.subr.mxu0 0.0
    %1954 = vmatpush1.xpose.msra.mxu0 0.0
    %1955 = vmatprep.subr.mxu0 0.0
    %1956 = vmatpush1.xpose.msra.mxu0 0.0
    %1957 = vmatprep.subr.mxu0 0.0
    %1958 = vmatpush1.xpose.msra.mxu0 0.0
    %1959 = vmatprep.subr.mxu0 0.0
    %1960 = vmatpush1.xpose.msra.mxu0 0.0
    %1961 = vmatprep.subr.mxu0 0.0
    %1962 = vmatpush1.xpose.msra.mxu0 0.0
    %1963 = vmatprep.subr.mxu0 0.0
    %1964 = vmatpush1.xpose.msra.mxu0 0.0
    %1965 = vmatprep.subr.mxu0 0.0
    %1966 = vmatpush1.xpose.msra.mxu0 0.0
    %1967 = vmatprep.subr.mxu0 0.0
    %1968 = vmatpush1.xpose.msra.mxu0 0.0
    %1969 = vmatprep.subr.mxu0 0.0
    %1970 = vmatpush1.xpose.msra.mxu0 0.0
    %1971 = vmatprep.subr.mxu0 0.0
    %1972 = vmatpush1.xpose.msra.mxu0 0.0
    %1973 = vmatprep.subr.mxu0 0.0
    %1974 = vmatpush1.xpose.msra.mxu0 0.0
    %1975 = vmatprep.subr.mxu0 0.0
    %1976 = vmatpush1.xpose.msra.mxu0 0.0
    %1977 = vmatprep.subr.mxu0 0.0
    %1978 = vmatpush1.xpose.msra.mxu0 0.0
    %1979 = vmatprep.subr.mxu0 0.0
    %1980 = vmatpush1.xpose.msra.mxu0 0.0
    %1981 = vmatprep.subr.mxu0 0.0
    %1982 = vmatpush1.xpose.msra.mxu0 0.0
    %1983 = vmatprep.subr.mxu0 0.0
    %1984 = vmatpush1.xpose.msra.mxu0 0.0
    %1985 = vmatprep.subr.mxu0 0.0
    %1986 = vmatpush1.xpose.msra.mxu0 0.0
    %1987 = vmatprep.subr.mxu0 0.0
    %1988 = vmatpush1.xpose.msra.mxu0 0.0
    %1989 = vmatprep.subr.mxu0 0.0
    %1990 = vmatpush1.xpose.msra.mxu0 0.0
    %1991 = vmatprep.subr.mxu0 0.0
    %1992 = vmatpush1.xpose.msra.mxu0 0.0
    %1993 = vmatprep.subr.mxu0 0.0
    %1994 = vmatpush1.xpose.msra.mxu0 0.0
    %1995 = vmatprep.subr.mxu0 0.0
    %1996 = vmatpush1.xpose.msra.mxu0 0.0
    %1997 = vmatprep.subr.mxu0 0.0
    %1998 = vmatpush1.xpose.msra.mxu0 0.0
    %1999 = vmatprep.subr.mxu0 0.0
    %2000 = vmatpush1.xpose.msra.mxu0 0.0
    %2001 = vmatprep.mubr.f32.mxu0 0.0
    %2002 = vmatmul.mubr.f32.gmra.mrb[0].mxu0 %v1933
    %v2003 = vpop.f32.mrb[0].mxu0
    %v2004 = vadd.f32 %v1454, %v2003
    %v2005 = vpop.f32.mrb[0].mxu0
    %2006 = vdwg.mxu0
    %v2007 = vsel %vm477, %v2004, -inf
    %2008 = vmax.xlane.f32.xlu0 %v2007
    %v2009 = vpop.xlane.xlu0 %2008
    %v2010 = vsub.f32 %v2004, %v2009
    %v2011 = vmul.f32 %v2010, 1.442695
    %v2012 = vpow.pop %v2011
    %v2013 = vsel %vm477, %v2012, 0.0
    %2014 = vadd.xlane.f32.xlu0 %v2013
    %v2015 = vpop.xlane.xlu0 %2014
    %v2016 = vrcp.pop %v2015
    %v2017 = vmul.f32 %v2012, %v2016
    %2018 = vrot.lane.b32.xlu0 %v398, 112
    %v2019 = vpop.permute.xlu0 %2018
    %v2022 = vsel %vm477, %v2017, 0
    %2024 = vmatprep.subr.mxu0 0.0
    %2025 = vmatpush1.msra.mxu0 %v2019
    %2026 = vmatprep.subr.mxu0 0.0
    %2027 = vmatpush1.msra.mxu0 0.0
    %2028 = vmatprep.subr.mxu0 0.0
    %2029 = vmatpush1.msra.mxu0 0.0
    %2030 = vmatprep.subr.mxu0 0.0
    %2031 = vmatpush1.msra.mxu0 0.0
    %2032 = vmatprep.subr.mxu0 0.0
    %2033 = vmatpush1.msra.mxu0 0.0
    %2034 = vmatprep.subr.mxu0 0.0
    %2035 = vmatpush1.msra.mxu0 0.0
    %2036 = vmatprep.subr.mxu0 0.0
    %2037 = vmatpush1.msra.mxu0 0.0
    %2038 = vmatprep.subr.mxu0 0.0
    %2039 = vmatpush1.msra.mxu0 0.0
    %2040 = vmatprep.subr.mxu0 0.0
    %2041 = vmatpush1.msra.mxu0 0.0
    %2042 = vmatprep.subr.mxu0 0.0
    %2043 = vmatpush1.msra.mxu0 0.0
    %2044 = vmatprep.subr.mxu0 0.0
    %2045 = vmatpush1.msra.mxu0 0.0
    %2046 = vmatprep.subr.mxu0 0.0
    %2047 = vmatpush1.msra.mxu0 0.0
    %2048 = vmatprep.subr.mxu0 0.0
    %2049 = vmatpush1.msra.mxu0 0.0
    %2050 = vmatprep.subr.mxu0 0.0
    %2051 = vmatpush1.msra.mxu0 0.0
    %2052 = vmatprep.subr.mxu0 0.0
    %2053 = vmatpush1.msra.mxu0 0.0
    %2054 = vmatprep.subr.mxu0 0.0
    %2055 = vmatpush1.msra.mxu0 0.0
    %2056 = vmatprep.subr.mxu0 0.0
    %2057 = vmatpush1.msra.mxu0 0.0
    %2058 = vmatprep.subr.mxu0 0.0
    %2059 = vmatpush1.msra.mxu0 0.0
    %2060 = vmatprep.subr.mxu0 0.0
    %2061 = vmatpush1.msra.mxu0 0.0
    %2062 = vmatprep.subr.mxu0 0.0
    %2063 = vmatpush1.msra.mxu0 0.0
    %2064 = vmatprep.subr.mxu0 0.0
    %2065 = vmatpush1.msra.mxu0 0.0
    %2066 = vmatprep.subr.mxu0 0.0
    %2067 = vmatpush1.msra.mxu0 0.0
    %2068 = vmatprep.subr.mxu0 0.0
    %2069 = vmatpush1.msra.mxu0 0.0
    %2070 = vmatprep.subr.mxu0 0.0
    %2071 = vmatpush1.msra.mxu0 0.0
    %2072 = vmatprep.subr.mxu0 0.0
    %2073 = vmatpush1.msra.mxu0 0.0
    %2074 = vmatprep.subr.mxu0 0.0
    %2075 = vmatpush1.msra.mxu0 0.0
    %2076 = vmatprep.subr.mxu0 0.0
    %2077 = vmatpush1.msra.mxu0 0.0
    %2078 = vmatprep.subr.mxu0 0.0
    %2079 = vmatpush1.msra.mxu0 0.0
    %2080 = vmatprep.subr.mxu0 0.0
    %2081 = vmatpush1.msra.mxu0 0.0
    %2082 = vmatprep.subr.mxu0 0.0
    %2083 = vmatpush1.msra.mxu0 0.0
    %2084 = vmatprep.subr.mxu0 0.0
    %2085 = vmatpush1.msra.mxu0 0.0
    %2086 = vmatprep.subr.mxu0 0.0
    %2087 = vmatpush1.msra.mxu0 0.0
    %2088 = vmatprep.mubr.f32.mxu0 0.0
    %2089 = vmatmul.mubr.f32.gmra.mrb[0].mxu0 %v2022
    %v2090 = vpop.f32.mrb[0].mxu0
    %v2091 = vadd.f32 0.0, %v2090
    %v2092 = vpop.f32.mrb[0].mxu0
    %2093 = vdwg.mxu0
    %v2095 = vsel %vm477, %v2091, 0
    %2097 = vmatprep.subr.mxu0 0.0
    %2098 = vmatpush1.msra.mxu0 %v143
    %2099 = vmatprep.subr.mxu0 0.0
    %2100 = vmatpush1.msra.mxu0 0.0
    %2101 = vmatprep.subr.mxu0 0.0
    %2102 = vmatpush1.msra.mxu0 0.0
    %2103 = vmatprep.subr.mxu0 0.0
    %2104 = vmatpush1.msra.mxu0 0.0
    %2105 = vmatprep.subr.mxu0 0.0
    %2106 = vmatpush1.msra.mxu0 0.0
    %2107 = vmatprep.subr.mxu0 0.0
    %2108 = vmatpush1.msra.mxu0 0.0
    %2109 = vmatprep.subr.mxu0 0.0
    %2110 = vmatpush1.msra.mxu0 0.0
    %2111 = vmatprep.subr.mxu0 0.0
    %2112 = vmatpush1.msra.mxu0 0.0
    %2113 = vmatprep.subr.mxu0 0.0
    %2114 = vmatpush1.msra.mxu0 0.0
    %2115 = vmatprep.subr.mxu0 0.0
    %2116 = vmatpush1.msra.mxu0 0.0
    %2117 = vmatprep.subr.mxu0 0.0
    %2118 = vmatpush1.msra.mxu0 0.0
    %2119 = vmatprep.subr.mxu0 0.0
    %2120 = vmatpush1.msra.mxu0 0.0
    %2121 = vmatprep.subr.mxu0 0.0
    %2122 = vmatpush1.msra.mxu0 0.0
    %2123 = vmatprep.subr.mxu0 0.0
    %2124 = vmatpush1.msra.mxu0 0.0
    %2125 = vmatprep.subr.mxu0 0.0
    %2126 = vmatpush1.msra.mxu0 0.0
    %2127 = vmatprep.subr.mxu0 0.0
    %2128 = vmatpush1.msra.mxu0 0.0
    %2129 = vmatprep.subr.mxu0 0.0
    %2130 = vmatpush1.msra.mxu0 0.0
    %2131 = vmatprep.subr.mxu0 0.0
    %2132 = vmatpush1.msra.mxu0 0.0
    %2133 = vmatprep.subr.mxu0 0.0
    %2134 = vmatpush1.msra.mxu0 0.0
    %2135 = vmatprep.subr.mxu0 0.0
    %2136 = vmatpush1.msra.mxu0 0.0
    %2137 = vmatprep.subr.mxu0 0.0
    %2138 = vmatpush1.msra.mxu0 0.0
    %2139 = vmatprep.subr.mxu0 0.0
    %2140 = vmatpush1.msra.mxu0 0.0
    %2141 = vmatprep.subr.mxu0 0.0
    %2142 = vmatpush1.msra.mxu0 0.0
    %2143 = vmatprep.subr.mxu0 0.0
    %2144 = vmatpush1.msra.mxu0 0.0
    %2145 = vmatprep.subr.mxu0 0.0
    %2146 = vmatpush1.msra.mxu0 0.0
    %2147 = vmatprep.subr.mxu0 0.0
    %2148 = vmatpush1.msra.mxu0 0.0
    %2149 = vmatprep.subr.mxu0 0.0
    %2150 = vmatpush1.msra.mxu0 0.0
    %2151 = vmatprep.subr.mxu0 0.0
    %2152 = vmatpush1.msra.mxu0 0.0
    %2153 = vmatprep.subr.mxu0 0.0
    %2154 = vmatpush1.msra.mxu0 0.0
    %2155 = vmatprep.subr.mxu0 0.0
    %2156 = vmatpush1.msra.mxu0 0.0
    %2157 = vmatprep.subr.mxu0 0.0
    %2158 = vmatpush1.msra.mxu0 0.0
    %2159 = vmatprep.subr.mxu0 0.0
    %2160 = vmatpush1.msra.mxu0 0.0
    %2161 = vmatprep.mubr.f32.mxu0 0.0
    %2162 = vmatmul.mubr.f32.gmra.mrb[0].mxu0 %v2095
    %v2163 = vpop.f32.mrb[0].mxu0
    %v2164 = vadd.f32 0.0, %v2163
    %v2165 = vpop.f32.mrb[0].mxu0
    %2166 = vdwg.mxu0
    %v2167 = vadd.f32 %v1924, %v2164
    %2168 = vrot.lane.b32.xlu0 %v444, 104
    %v2169 = vpop.permute.xlu0 %2168
    %2170 = vrot.lane.b32.xlu0 %v472, 104
    %v2171 = vpop.permute.xlu0 %2170
    %v2172 = vsel %vm477, %v2169, 0
    %v2174 = vsel %vm477, %v2171, 0
    %2176 = vmatprep.subr.mxu0 0.0
    %2177 = vmatpush1.xpose.msra.mxu0 %v2174
    %2178 = vmatprep.subr.mxu0 0.0
    %2179 = vmatpush1.xpose.msra.mxu0 0.0
    %2180 = vmatprep.subr.mxu0 0.0
    %2181 = vmatpush1.xpose.msra.mxu0 0.0
    %2182 = vmatprep.subr.mxu0 0.0
    %2183 = vmatpush1.xpose.msra.mxu0 0.0
    %2184 = vmatprep.subr.mxu0 0.0
    %2185 = vmatpush1.xpose.msra.mxu0 0.0
    %2186 = vmatprep.subr.mxu0 0.0
    %2187 = vmatpush1.xpose.msra.mxu0 0.0
    %2188 = vmatprep.subr.mxu0 0.0
    %2189 = vmatpush1.xpose.msra.mxu0 0.0
    %2190 = vmatprep.subr.mxu0 0.0
    %2191 = vmatpush1.xpose.msra.mxu0 0.0
    %2192 = vmatprep.subr.mxu0 0.0
    %2193 = vmatpush1.xpose.msra.mxu0 0.0
    %2194 = vmatprep.subr.mxu0 0.0
    %2195 = vmatpush1.xpose.msra.mxu0 0.0
    %2196 = vmatprep.subr.mxu0 0.0
    %2197 = vmatpush1.xpose.msra.mxu0 0.0
    %2198 = vmatprep.subr.mxu0 0.0
    %2199 = vmatpush1.xpose.msra.mxu0 0.0
    %2200 = vmatprep.subr.mxu0 0.0
    %2201 = vmatpush1.xpose.msra.mxu0 0.0
    %2202 = vmatprep.subr.mxu0 0.0
    %2203 = vmatpush1.xpose.msra.mxu0 0.0
    %2204 = vmatprep.subr.mxu0 0.0
    %2205 = vmatpush1.xpose.msra.mxu0 0.0
    %2206 = vmatprep.subr.mxu0 0.0
    %2207 = vmatpush1.xpose.msra.mxu0 0.0
    %2208 = vmatprep.subr.mxu0 0.0
    %2209 = vmatpush1.xpose.msra.mxu0 0.0
    %2210 = vmatprep.subr.mxu0 0.0
    %2211 = vmatpush1.xpose.msra.mxu0 0.0
    %2212 = vmatprep.subr.mxu0 0.0
    %2213 = vmatpush1.xpose.msra.mxu0 0.0
    %2214 = vmatprep.subr.mxu0 0.0
    %2215 = vmatpush1.xpose.msra.mxu0 0.0
    %2216 = vmatprep.subr.mxu0 0.0
    %2217 = vmatpush1.xpose.msra.mxu0 0.0
    %2218 = vmatprep.subr.mxu0 0.0
    %2219 = vmatpush1.xpose.msra.mxu0 0.0
    %2220 = vmatprep.subr.mxu0 0.0
    %2221 = vmatpush1.xpose.msra.mxu0 0.0
    %2222 = vmatprep.subr.mxu0 0.0
    %2223 = vmatpush1.xpose.msra.mxu0 0.0
    %2224 = vmatprep.subr.mxu0 0.0
    %2225 = vmatpush1.xpose.msra.mxu0 0.0
    %2226 = vmatprep.subr.mxu0 0.0
    %2227 = vmatpush1.xpose.msra.mxu0 0.0
    %2228 = vmatprep.subr.mxu0 0.0
    %2229 = vmatpush1.xpose.msra.mxu0 0.0
    %2230 = vmatprep.subr.mxu0 0.0
    %2231 = vmatpush1.xpose.msra.mxu0 0.0
    %2232 = vmatprep.subr.mxu0 0.0
    %2233 = vmatpush1.xpose.msra.mxu0 0.0
    %2234 = vmatprep.subr.mxu0 0.0
    %2235 = vmatpush1.xpose.msra.mxu0 0.0
    %2236 = vmatprep.subr.mxu0 0.0
    %2237 = vmatpush1.xpose.msra.mxu0 0.0
    %2238 = vmatprep.subr.mxu0 0.0
    %2239 = vmatpush1.xpose.msra.mxu0 0.0
    %2240 = vmatprep.mubr.f32.mxu0 0.0
    %2241 = vmatmul.mubr.f32.gmra.mrb[0].mxu0 %v2172
    %v2242 = vpop.f32.mrb[0].mxu0
    %v2243 = vadd.f32 %v1454, %v2242
    %v2244 = vpop.f32.mrb[0].mxu0
    %2245 = vdwg.mxu0
    %v2246 = vsel %vm477, %v2243, -inf
    %2247 = vmax.xlane.f32.xlu0 %v2246
    %v2248 = vpop.xlane.xlu0 %2247
    %v2249 = vsub.f32 %v2243, %v2248
    %v2250 = vmul.f32 %v2249, 1.442695
    %v2251 = vpow.pop %v2250
    %v2252 = vsel %vm477, %v2251, 0.0
    %2253 = vadd.xlane.f32.xlu0 %v2252
    %v2254 = vpop.xlane.xlu0 %2253
    %v2255 = vrcp.pop %v2254
    %v2256 = vmul.f32 %v2251, %v2255
    %2257 = vrot.lane.b32.xlu0 %v398, 104
    %v2258 = vpop.permute.xlu0 %2257
    %v2261 = vsel %vm477, %v2256, 0
    %2263 = vmatprep.subr.mxu0 0.0
    %2264 = vmatpush1.msra.mxu0 %v2258
    %2265 = vmatprep.subr.mxu0 0.0
    %2266 = vmatpush1.msra.mxu0 0.0
    %2267 = vmatprep.subr.mxu0 0.0
    %2268 = vmatpush1.msra.mxu0 0.0
    %2269 = vmatprep.subr.mxu0 0.0
    %2270 = vmatpush1.msra.mxu0 0.0
    %2271 = vmatprep.subr.mxu0 0.0
    %2272 = vmatpush1.msra.mxu0 0.0
    %2273 = vmatprep.subr.mxu0 0.0
    %2274 = vmatpush1.msra.mxu0 0.0
    %2275 = vmatprep.subr.mxu0 0.0
    %2276 = vmatpush1.msra.mxu0 0.0
    %2277 = vmatprep.subr.mxu0 0.0
    %2278 = vmatpush1.msra.mxu0 0.0
    %2279 = vmatprep.subr.mxu0 0.0
    %2280 = vmatpush1.msra.mxu0 0.0
    %2281 = vmatprep.subr.mxu0 0.0
    %2282 = vmatpush1.msra.mxu0 0.0
    %2283 = vmatprep.subr.mxu0 0.0
    %2284 = vmatpush1.msra.mxu0 0.0
    %2285 = vmatprep.subr.mxu0 0.0
    %2286 = vmatpush1.msra.mxu0 0.0
    %2287 = vmatprep.subr.mxu0 0.0
    %2288 = vmatpush1.msra.mxu0 0.0
    %2289 = vmatprep.subr.mxu0 0.0
    %2290 = vmatpush1.msra.mxu0 0.0
    %2291 = vmatprep.subr.mxu0 0.0
    %2292 = vmatpush1.msra.mxu0 0.0
    %2293 = vmatprep.subr.mxu0 0.0
    %2294 = vmatpush1.msra.mxu0 0.0
    %2295 = vmatprep.subr.mxu0 0.0
    %2296 = vmatpush1.msra.mxu0 0.0
    %2297 = vmatprep.subr.mxu0 0.0
    %2298 = vmatpush1.msra.mxu0 0.0
    %2299 = vmatprep.subr.mxu0 0.0
    %2300 = vmatpush1.msra.mxu0 0.0
    %2301 = vmatprep.subr.mxu0 0.0
    %2302 = vmatpush1.msra.mxu0 0.0
    %2303 = vmatprep.subr.mxu0 0.0
    %2304 = vmatpush1.msra.mxu0 0.0
    %2305 = vmatprep.subr.mxu0 0.0
    %2306 = vmatpush1.msra.mxu0 0.0
    %2307 = vmatprep.subr.mxu0 0.0
    %2308 = vmatpush1.msra.mxu0 0.0
    %2309 = vmatprep.subr.mxu0 0.0
    %2310 = vmatpush1.msra.mxu0 0.0
    %2311 = vmatprep.subr.mxu0 0.0
    %2312 = vmatpush1.msra.mxu0 0.0
    %2313 = vmatprep.subr.mxu0 0.0
    %2314 = vmatpush1.msra.mxu0 0.0
    %2315 = vmatprep.subr.mxu0 0.0
    %2316 = vmatpush1.msra.mxu0 0.0
    %2317 = vmatprep.subr.mxu0 0.0
    %2318 = vmatpush1.msra.mxu0 0.0
    %2319 = vmatprep.subr.mxu0 0.0
    %2320 = vmatpush1.msra.mxu0 0.0
    %2321 = vmatprep.subr.mxu0 0.0
    %2322 = vmatpush1.msra.mxu0 0.0
    %2323 = vmatprep.subr.mxu0 0.0
    %2324 = vmatpush1.msra.mxu0 0.0
    %2325 = vmatprep.subr.mxu0 0.0
    %2326 = vmatpush1.msra.mxu0 0.0
    %2327 = vmatprep.mubr.f32.mxu0 0.0
    %2328 = vmatmul.mubr.f32.gmra.mrb[0].mxu0 %v2261
    %v2329 = vpop.f32.mrb[0].mxu0
    %v2330 = vadd.f32 0.0, %v2329
    %v2331 = vpop.f32.mrb[0].mxu0
    %2332 = vdwg.mxu0
    %v2334 = vsel %vm477, %v2330, 0
    %2336 = vmatprep.subr.mxu0 0.0
    %2337 = vmatpush1.msra.mxu0 %v144
    %2338 = vmatprep.subr.mxu0 0.0
    %2339 = vmatpush1.msra.mxu0 0.0
    %2340 = vmatprep.subr.mxu0 0.0
    %2341 = vmatpush1.msra.mxu0 0.0
    %2342 = vmatprep.subr.mxu0 0.0
    %2343 = vmatpush1.msra.mxu0 0.0
    %2344 = vmatprep.subr.mxu0 0.0
    %2345 = vmatpush1.msra.mxu0 0.0
    %2346 = vmatprep.subr.mxu0 0.0
    %2347 = vmatpush1.msra.mxu0 0.0
    %2348 = vmatprep.subr.mxu0 0.0
    %2349 = vmatpush1.msra.mxu0 0.0
    %2350 = vmatprep.subr.mxu0 0.0
    %2351 = vmatpush1.msra.mxu0 0.0
    %2352 = vmatprep.subr.mxu0 0.0
    %2353 = vmatpush1.msra.mxu0 0.0
    %2354 = vmatprep.subr.mxu0 0.0
    %2355 = vmatpush1.msra.mxu0 0.0
    %2356 = vmatprep.subr.mxu0 0.0
    %2357 = vmatpush1.msra.mxu0 0.0
    %2358 = vmatprep.subr.mxu0 0.0
    %2359 = vmatpush1.msra.mxu0 0.0
    %2360 = vmatprep.subr.mxu0 0.0
    %2361 = vmatpush1.msra.mxu0 0.0
    %2362 = vmatprep.subr.mxu0 0.0
    %2363 = vmatpush1.msra.mxu0 0.0
    %2364 = vmatprep.subr.mxu0 0.0
    %2365 = vmatpush1.msra.mxu0 0.0
    %2366 = vmatprep.subr.mxu0 0.0
    %2367 = vmatpush1.msra.mxu0 0.0
    %2368 = vmatprep.subr.mxu0 0.0
    %2369 = vmatpush1.msra.mxu0 0.0
    %2370 = vmatprep.subr.mxu0 0.0
    %2371 = vmatpush1.msra.mxu0 0.0
    %2372 = vmatprep.subr.mxu0 0.0
    %2373 = vmatpush1.msra.mxu0 0.0
    %2374 = vmatprep.subr.mxu0 0.0
    %2375 = vmatpush1.msra.mxu0 0.0
    %2376 = vmatprep.subr.mxu0 0.0
    %2377 = vmatpush1.msra.mxu0 0.0
    %2378 = vmatprep.subr.mxu0 0.0
    %2379 = vmatpush1.msra.mxu0 0.0
    %2380 = vmatprep.subr.mxu0 0.0
    %2381 = vmatpush1.msra.mxu0 0.0
    %2382 = vmatprep.subr.mxu0 0.0
    %2383 = vmatpush1.msra.mxu0 0.0
    %2384 = vmatprep.subr.mxu0 0.0
    %2385 = vmatpush1.msra.mxu0 0.0
    %2386 = vmatprep.subr.mxu0 0.0
    %2387 = vmatpush1.msra.mxu0 0.0
    %2388 = vmatprep.subr.mxu0 0.0
    %2389 = vmatpush1.msra.mxu0 0.0
    %2390 = vmatprep.subr.mxu0 0.0
    %2391 = vmatpush1.msra.mxu0 0.0
    %2392 = vmatprep.subr.mxu0 0.0
    %2393 = vmatpush1.msra.mxu0 0.0
    %2394 = vmatprep.subr.mxu0 0.0
    %2395 = vmatpush1.msra.mxu0 0.0
    %2396 = vmatprep.subr.mxu0 0.0
    %2397 = vmatpush1.msra.mxu0 0.0
    %2398 = vmatprep.subr.mxu0 0.0
    %2399 = vmatpush1.msra.mxu0 0.0
    %2400 = vmatprep.mubr.f32.mxu0 0.0
    %2401 = vmatmul.mubr.f32.gmra.mrb[0].mxu0 %v2334
    %v2402 = vpop.f32.mrb[0].mxu0
    %v2403 = vadd.f32 0.0, %v2402
    %v2404 = vpop.f32.mrb[0].mxu0
    %2405 = vdwg.mxu0
    %v2406 = vadd.f32 %v2167, %v2403
    %2407 = vrot.lane.b32.xlu0 %v1541, 32
    %v2408 = vpop.permute.xlu0 %2407
    %2410 = vrot.lane.b32.xlu0 %v1703, 40
    %v2411 = vpop.permute.xlu0 %2410
    %2413 = vrot.lane.b32.xlu0 %v2017, 48
    %v2414 = vpop.permute.xlu0 %2413
    %2416 = vrot.lane.b32.xlu0 %v2256, 56
    %v2417 = vpop.permute.xlu0 %2416
    %v2419 = vsel %vm149, %v2406, %v2408
    %v2420 = vsel %vm1443, %v2419, %v2411
    %v2421 = vsel %vm1445, %v2420, %v2414
    %v2422 = vsel %vm1447, %v2421, %v2417
    %s2423 = scalar_lea.vmem %s10, 8
    %2424 = vst.msk [vmem:[%s2423] sm:$0xff] %vm1449, %v2422
    // Predicated region
    $region70: #{multi_head_attention.1} parent=1 // pred_check
      _
    $region71: #{multi_head_attention.1} parent=1 // pred_check_branch
      %2426 = sbr.rel (0) target = $region73
    $region72: #{multi_head_attention.1} parent=1 // pred_region
      _
    $region73: #{multi_head_attention.1} parent=1 // pred_fallthru
      _
    // Predicated region
    $region74: #{multi_head_attention.1} parent=1 // pred_check
      _
    $region75: #{multi_head_attention.1} parent=1 // pred_check_branch
      %2428 = sbr.rel (0) target = $region77
    $region76: #{multi_head_attention.1} parent=1 // pred_region
      _
    $region77: #{multi_head_attention.1} parent=1 // pred_fallthru
      _
    %2429 = vsyncpa [#allocation3], 1
    %2430 = vsyncpa [#allocation5], 1
    %2431 = vsyncpa [#allocation8], 1
    %2432 = vsyncpa [#allocation11], 1

</llo_original>
